<compile_context>
chip_gen: v6e
topology: v6e:2x2x1
jax: 0.10.0
libtpu: 0.0.40
codegen_flags: <defaults>
</compile_context>

<pallas_src>
import functools

import jax
import jax.numpy as jnp
from jax import lax
from jax.experimental import pallas as pl
from jax.experimental.pallas import tpu as pltpu


def _repvggdw_kernel(x_ref, w_ref, b_ref, o_ref, xpad_ref, *, K, pad):
    """One (channel-group, batch) block.

    x_ref    : (1, H, W, CB)              VMEM   input slab (channels-last)
    w_ref    : (K*K, 1, CB)               VMEM   folded depthwise taps (lane vectors)
    b_ref    : (1, 1, CB)                 VMEM   folded per-channel bias
    o_ref    : (1, H, W, CB)              VMEM   output slab
    xpad_ref : (H+2p, W+2p, CB) float32   VMEM   scratch for the zero-padded plane
    """
    _, H, W, _ = o_ref.shape

    # Build the zero-padded plane in VMEM (halo handled in-kernel; no HBM pad copy).
    xpad_ref[...] = jnp.zeros_like(xpad_ref)
    xpad_ref[pl.ds(pad, H), pl.ds(pad, W), :] = x_ref[0].astype(jnp.float32)
    xpad = xpad_ref[...]                                   # (H+2p, W+2p, CB) f32

    w = w_ref[...].astype(jnp.float32)                     # (K*K, 1, CB)
    b = b_ref[...].astype(jnp.float32)                     # (1, 1, CB)

    # Depthwise KxK conv = unrolled shift-and-accumulate (correlation, matching
    # PyTorch Conv2d).  dy shifts the outer (H) axis, dx shifts sublanes (W); the
    # lane (channel) axis is never shifted.  Init acc with tap 0 (no zeros pass).
    acc = w[0] * xpad[0:H, 0:W, :]
    for t in range(1, K * K):
        dy, dx = divmod(t, K)
        acc = acc + w[t] * xpad[dy:dy + H, dx:dx + W, :]

    o_ref[0] = (acc + b).astype(o_ref.dtype)


def _fold_params(conv_w, bn1_params, conv1x1_w, conv1x1_b, bn2_params, eps):
    """Fold BN1/BN2/1x1/identity into a single depthwise conv + bias (host-side)."""
    C = conv_w.shape[0]
    K = conv_w.shape[-1]
    gamma1, beta1, mean1, var1 = bn1_params
    gamma2, beta2, mean2, var2 = bn2_params

    scale1 = gamma1 / jnp.sqrt(var1 + eps)
    bias1 = beta1 - mean1 * scale1
    scale2 = gamma2 / jnp.sqrt(var2 + eps)
    bias2 = beta2 - mean2 * scale2
    w11 = conv1x1_w.reshape(C)

    eff_w = (scale2 * scale1)[None, :] * conv_w.reshape(C, K * K).T       # (K*K, C)
    center = (K // 2) * K + (K // 2)
    eff_w = eff_w.at[center].add(scale2 * (w11 + 1.0))                    # 1x1 + identity
    eff_b = scale2 * (bias1 + conv1x1_b) + bias2                          # (C,)

    return (eff_w.reshape(K * K, 1, C).astype(jnp.float32),
            eff_b.reshape(1, 1, C).astype(jnp.float32))


def _channel_block(C, H, W, pad, itemsize):
    """Pick a lane-dense channel group that double-buffers within a conservative
    VMEM budget (sized for v7x's smaller 64 MiB / 32 MiB-scoped VMEM)."""
    if C % 128 != 0:
        return C                                   # small/ragged C: whole-C block
    budget = 24 * 1024 * 1024
    candidates = [c for c in (512, 256, 128) if C % c == 0]
    for cb in candidates:
        blk = H * W * cb * itemsize * 2 * 2        # in + out, double-buffered
        blk += (H + 2 * pad) * (W + 2 * pad) * cb * 4   # f32 padded scratch
        if blk <= budget:
            return cb
    return candidates[-1]


def repvggdw_forward_nhwc(x, eff_w, eff_b, K):
    """Core kernel entry. x: (N, H, W, C) channels-last, folded params from _fold_params."""
    N, H, W, C = x.shape
    KK = K * K
    pad = K // 2
    cb = _channel_block(C, H, W, pad, x.dtype.itemsize)
    G = C // cb

    kernel = functools.partial(_repvggdw_kernel, K=K, pad=pad)

    return pl.pallas_call(
        kernel,
        out_shape=jax.ShapeDtypeStruct((N, H, W, C), x.dtype),
        grid_spec=pltpu.PrefetchScalarGridSpec(
            num_scalar_prefetch=0,
            grid=(G, N),                           # channel-group outer, batch inner:
            in_specs=[                             # taps/bias fetched once per group
                pl.BlockSpec((1, H, W, cb), lambda g, n: (n, 0, 0, g)),
                pl.BlockSpec((KK, 1, cb), lambda g, n: (0, 0, g)),
                pl.BlockSpec((1, 1, cb), lambda g, n: (0, 0, g)),
            ],
            out_specs=pl.BlockSpec((1, H, W, cb), lambda g, n: (n, 0, 0, g)),
            scratch_shapes=[pltpu.VMEM((H + 2 * pad, W + 2 * pad, cb), jnp.float32)],
        ),
        compiler_params=pltpu.CompilerParams(
            dimension_semantics=("parallel", "parallel")),
    )(x, eff_w, eff_b)


def repvggdw_forward(x, conv_w, bn1_params, conv1x1_w, conv1x1_b, bn2_params, eps=1e-5):
    """PyTorch-compatible entry: x in (N, C, H, W).

    The NCHW<->NHWC transposes below exist only for PyTorch interface parity; in an
    end-to-end channels-last network call repvggdw_forward_nhwc directly and they vanish.
    """
    K = conv_w.shape[-1]
    eff_w, eff_b = _fold_params(conv_w, bn1_params, conv1x1_w, conv1x1_b, bn2_params, eps)
    x_nhwc = jnp.transpose(x, (0, 2, 3, 1))
    y_nhwc = repvggdw_forward_nhwc(x_nhwc, eff_w, eff_b, K)
    return jnp.transpose(y_nhwc, (0, 3, 1, 2))


def repvggdw_reference(x, conv_w, bn1_params, conv1x1_w, conv1x1_b, bn2_params, eps=1e-5):
    """Pure-JAX reference (same math, via lax.conv_general_dilated)."""
    N, C, H, W = x.shape
    K = conv_w.shape[-1]
    pad = K // 2
    gamma1, beta1, mean1, var1 = bn1_params
    gamma2, beta2, mean2, var2 = bn2_params
    scale1 = gamma1 / jnp.sqrt(var1 + eps)
    bias1 = beta1 - mean1 * scale1
    scale2 = gamma2 / jnp.sqrt(var2 + eps)
    bias2 = beta2 - mean2 * scale2

    dw = lax.conv_general_dilated(
        x, conv_w, window_strides=(1, 1), padding=((pad, pad), (pad, pad)),
        dimension_numbers=("NCHW", "OIHW", "NCHW"), feature_group_count=C)
    b1 = dw * scale1[None, :, None, None] + bias1[None, :, None, None]
    b2 = x * conv1x1_w.reshape(1, C, 1, 1) + conv1x1_b[None, :, None, None]
    return (b1 + b2 + x) * scale2[None, :, None, None] + bias2[None, :, None, None]


if __name__ == "__main__":
    # Module config: RepVggDW(dim=4, kernel_size=3, use_se=False, reparameterized=False)
    N, C, H, W = 2, 4, 16, 16
    K = 3

    key = jax.random.PRNGKey(0)
    ks = jax.random.split(key, 8)

    x = jax.random.normal(ks[0], (N, C, H, W), jnp.float32)

    # RepConvBN: depthwise Conv2d(dim, dim, k=3, groups=dim, bias=False) + BatchNorm2d(dim)
    conv_w = jax.random.normal(ks[1], (C, 1, K, K), jnp.float32) * 0.2
    bn1 = (
        jnp.ones((C,), jnp.float32),                                   # weight (bn_weight_init=1.0)
        jnp.zeros((C,), jnp.float32),                                  # bias (zeros_)
        0.1 * jax.random.normal(ks[2], (C,), jnp.float32),             # running_mean
        0.5 + jax.random.uniform(ks[3], (C,), jnp.float32),            # running_var (>0)
    )

    # conv1x1: depthwise Conv2d(dim, dim, k=1, groups=dim) with bias
    conv1x1_w = jax.random.normal(ks[4], (C, 1, 1, 1), jnp.float32) * 0.2
    conv1x1_b = 0.1 * jax.random.normal(ks[5], (C,), jnp.float32)

    # outer BatchNorm2d(dim)
    bn2 = (
        1.0 + 0.1 * jax.random.normal(ks[6], (C,), jnp.float32),       # weight
        0.1 * jax.random.normal(ks[7], (C,), jnp.float32),             # bias
        jnp.zeros((C,), jnp.float32),                                  # running_mean
        jnp.ones((C,), jnp.float32),                                   # running_var
    )

    out = repvggdw_forward(x, conv_w, bn1, conv1x1_w, conv1x1_b, bn2)
    out = jax.block_until_ready(out)

    ref = repvggdw_reference(x, conv_w, bn1, conv1x1_w, conv1x1_b, bn2)
    assert out.shape == (N, C, H, W)
    assert jnp.allclose(out, ref, atol=1e-4, rtol=1e-4), "mismatch vs JAX reference"

    print("KERNEL_OK")
</pallas_src>

<mosaic_0001>
module attributes {stable_mosaic.version = 11 : i64} {
  func.func @_repvggdw_kernel(%arg0: i32, %arg1: i32, %arg2: memref<1x16x16x4xf32, #tpu.memory_space<vmem>>, %arg3: memref<9x1x4xf32, #tpu.memory_space<vmem>>, %arg4: memref<1x1x4xf32, #tpu.memory_space<vmem>>, %arg5: memref<1x16x16x4xf32, #tpu.memory_space<vmem>>, %arg6: memref<18x18x4xf32, #tpu.memory_space<vmem>>) attributes {dimension_semantics = [#tpu.dimension_semantics<parallel>, #tpu.dimension_semantics<parallel>], iteration_bounds = array<i64: 1, 2>, scalar_prefetch = 0 : i64, scratch_operands = 1 : i64, tpu.core_type = #tpu.core_type<tc>, window_params = [{transform_indices = @transform_0, window_bounds = array<i64: 1, 16, 16, 4>}, {transform_indices = @transform_1, window_bounds = array<i64: 9, 1, 4>}, {transform_indices = @transform_2, window_bounds = array<i64: 1, 1, 4>}, {transform_indices = @transform_3, window_bounds = array<i64: 1, 16, 16, 4>}]} {
    %cst = arith.constant 0.000000e+00 : f32
    %0 = vector.broadcast %cst : f32 to vector<18x18x4xf32>
    %c0 = arith.constant 0 : index
    %c0_0 = arith.constant 0 : index
    %c0_1 = arith.constant 0 : index
    %1 = vector.load %arg6[%c0, %c0_0, %c0_1] : memref<18x18x4xf32, #tpu.memory_space<vmem>>, vector<18x18x4xf32>
    tpu.vector_store %arg6[%c0, %c0_0, %c0_1], %0 {strides = array<i32>} : memref<18x18x4xf32, #tpu.memory_space<vmem>>, vector<18x18x4xf32>,
    %c0_2 = arith.constant 0 : index
    %c0_3 = arith.constant 0 : index
    %c0_4 = arith.constant 0 : index
    %c0_5 = arith.constant 0 : index
    %2 = vector.load %arg2[%c0_2, %c0_3, %c0_4, %c0_5] : memref<1x16x16x4xf32, #tpu.memory_space<vmem>>, vector<1x16x16x4xf32>
    %3 = vector.shape_cast %2 : vector<1x16x16x4xf32> to vector<16x16x4xf32>
    %c1 = arith.constant 1 : index
    %c1_6 = arith.constant 1 : index
    %c0_7 = arith.constant 0 : index
    %4 = vector.load %arg6[%c1, %c1_6, %c0_7] : memref<18x18x4xf32, #tpu.memory_space<vmem>>, vector<16x16x4xf32>
    tpu.vector_store %arg6[%c1, %c1_6, %c0_7], %3 {strides = array<i32>} : memref<18x18x4xf32, #tpu.memory_space<vmem>>, vector<16x16x4xf32>,
    %c0_8 = arith.constant 0 : index
    %c0_9 = arith.constant 0 : index
    %c0_10 = arith.constant 0 : index
    %5 = vector.load %arg6[%c0_8, %c0_9, %c0_10] : memref<18x18x4xf32, #tpu.memory_space<vmem>>, vector<18x18x4xf32>
    %c0_11 = arith.constant 0 : index
    %c0_12 = arith.constant 0 : index
    %c0_13 = arith.constant 0 : index
    %6 = vector.load %arg3[%c0_11, %c0_12, %c0_13] : memref<9x1x4xf32, #tpu.memory_space<vmem>>, vector<9x1x4xf32>
    %c0_14 = arith.constant 0 : index
    %c0_15 = arith.constant 0 : index
    %c0_16 = arith.constant 0 : index
    %7 = vector.load %arg4[%c0_14, %c0_15, %c0_16] : memref<1x1x4xf32, #tpu.memory_space<vmem>>, vector<1x1x4xf32>
    %8 = vector.extract_strided_slice %6 {offsets = [0, 0, 0], sizes = [1, 1, 4], strides = [1, 1, 1]} : vector<9x1x4xf32> to vector<1x1x4xf32>
    %9 = vector.shape_cast %8 : vector<1x1x4xf32> to vector<1x4xf32>
    %10 = vector.extract_strided_slice %5 {offsets = [0, 0, 0], sizes = [16, 16, 4], strides = [1, 1, 1]} : vector<18x18x4xf32> to vector<16x16x4xf32>
    %11 = vector.shape_cast %9 : vector<1x4xf32> to vector<1x1x4xf32>
    %12 = vector.broadcast %11 : vector<1x1x4xf32> to vector<16x16x4xf32>
    %13 = arith.mulf %12, %10 : vector<16x16x4xf32>
    %14 = vector.extract_strided_slice %6 {offsets = [1, 0, 0], sizes = [1, 1, 4], strides = [1, 1, 1]} : vector<9x1x4xf32> to vector<1x1x4xf32>
    %15 = vector.shape_cast %14 : vector<1x1x4xf32> to vector<1x4xf32>
    %16 = vector.extract_strided_slice %5 {offsets = [0, 1, 0], sizes = [16, 16, 4], strides = [1, 1, 1]} : vector<18x18x4xf32> to vector<16x16x4xf32>
    %17 = vector.shape_cast %15 : vector<1x4xf32> to vector<1x1x4xf32>
    %18 = vector.broadcast %17 : vector<1x1x4xf32> to vector<16x16x4xf32>
    %19 = arith.mulf %18, %16 : vector<16x16x4xf32>
    %20 = arith.addf %13, %19 : vector<16x16x4xf32>
    %21 = vector.extract_strided_slice %6 {offsets = [2, 0, 0], sizes = [1, 1, 4], strides = [1, 1, 1]} : vector<9x1x4xf32> to vector<1x1x4xf32>
    %22 = vector.shape_cast %21 : vector<1x1x4xf32> to vector<1x4xf32>
    %23 = vector.extract_strided_slice %5 {offsets = [0, 2, 0], sizes = [16, 16, 4], strides = [1, 1, 1]} : vector<18x18x4xf32> to vector<16x16x4xf32>
    %24 = vector.shape_cast %22 : vector<1x4xf32> to vector<1x1x4xf32>
    %25 = vector.broadcast %24 : vector<1x1x4xf32> to vector<16x16x4xf32>
    %26 = arith.mulf %25, %23 : vector<16x16x4xf32>
    %27 = arith.addf %20, %26 : vector<16x16x4xf32>
    %28 = vector.extract_strided_slice %6 {offsets = [3, 0, 0], sizes = [1, 1, 4], strides = [1, 1, 1]} : vector<9x1x4xf32> to vector<1x1x4xf32>
    %29 = vector.shape_cast %28 : vector<1x1x4xf32> to vector<1x4xf32>
    %30 = vector.extract_strided_slice %5 {offsets = [1, 0, 0], sizes = [16, 16, 4], strides = [1, 1, 1]} : vector<18x18x4xf32> to vector<16x16x4xf32>
    %31 = vector.shape_cast %29 : vector<1x4xf32> to vector<1x1x4xf32>
    %32 = vector.broadcast %31 : vector<1x1x4xf32> to vector<16x16x4xf32>
    %33 = arith.mulf %32, %30 : vector<16x16x4xf32>
    %34 = arith.addf %27, %33 : vector<16x16x4xf32>
    %35 = vector.extract_strided_slice %6 {offsets = [4, 0, 0], sizes = [1, 1, 4], strides = [1, 1, 1]} : vector<9x1x4xf32> to vector<1x1x4xf32>
    %36 = vector.shape_cast %35 : vector<1x1x4xf32> to vector<1x4xf32>
    %37 = vector.extract_strided_slice %5 {offsets = [1, 1, 0], sizes = [16, 16, 4], strides = [1, 1, 1]} : vector<18x18x4xf32> to vector<16x16x4xf32>
    %38 = vector.shape_cast %36 : vector<1x4xf32> to vector<1x1x4xf32>
    %39 = vector.broadcast %38 : vector<1x1x4xf32> to vector<16x16x4xf32>
    %40 = arith.mulf %39, %37 : vector<16x16x4xf32>
    %41 = arith.addf %34, %40 : vector<16x16x4xf32>
    %42 = vector.extract_strided_slice %6 {offsets = [5, 0, 0], sizes = [1, 1, 4], strides = [1, 1, 1]} : vector<9x1x4xf32> to vector<1x1x4xf32>
    %43 = vector.shape_cast %42 : vector<1x1x4xf32> to vector<1x4xf32>
    %44 = vector.extract_strided_slice %5 {offsets = [1, 2, 0], sizes = [16, 16, 4], strides = [1, 1, 1]} : vector<18x18x4xf32> to vector<16x16x4xf32>
    %45 = vector.shape_cast %43 : vector<1x4xf32> to vector<1x1x4xf32>
    %46 = vector.broadcast %45 : vector<1x1x4xf32> to vector<16x16x4xf32>
    %47 = arith.mulf %46, %44 : vector<16x16x4xf32>
    %48 = arith.addf %41, %47 : vector<16x16x4xf32>
    %49 = vector.extract_strided_slice %6 {offsets = [6, 0, 0], sizes = [1, 1, 4], strides = [1, 1, 1]} : vector<9x1x4xf32> to vector<1x1x4xf32>
    %50 = vector.shape_cast %49 : vector<1x1x4xf32> to vector<1x4xf32>
    %51 = vector.extract_strided_slice %5 {offsets = [2, 0, 0], sizes = [16, 16, 4], strides = [1, 1, 1]} : vector<18x18x4xf32> to vector<16x16x4xf32>
    %52 = vector.shape_cast %50 : vector<1x4xf32> to vector<1x1x4xf32>
    %53 = vector.broadcast %52 : vector<1x1x4xf32> to vector<16x16x4xf32>
    %54 = arith.mulf %53, %51 : vector<16x16x4xf32>
    %55 = arith.addf %48, %54 : vector<16x16x4xf32>
    %56 = vector.extract_strided_slice %6 {offsets = [7, 0, 0], sizes = [1, 1, 4], strides = [1, 1, 1]} : vector<9x1x4xf32> to vector<1x1x4xf32>
    %57 = vector.shape_cast %56 : vector<1x1x4xf32> to vector<1x4xf32>
    %58 = vector.extract_strided_slice %5 {offsets = [2, 1, 0], sizes = [16, 16, 4], strides = [1, 1, 1]} : vector<18x18x4xf32> to vector<16x16x4xf32>
    %59 = vector.shape_cast %57 : vector<1x4xf32> to vector<1x1x4xf32>
    %60 = vector.broadcast %59 : vector<1x1x4xf32> to vector<16x16x4xf32>
    %61 = arith.mulf %60, %58 : vector<16x16x4xf32>
    %62 = arith.addf %55, %61 : vector<16x16x4xf32>
    %63 = vector.extract_strided_slice %6 {offsets = [8, 0, 0], sizes = [1, 1, 4], strides = [1, 1, 1]} : vector<9x1x4xf32> to vector<1x1x4xf32>
    %64 = vector.shape_cast %63 : vector<1x1x4xf32> to vector<1x4xf32>
    %65 = vector.extract_strided_slice %5 {offsets = [2, 2, 0], sizes = [16, 16, 4], strides = [1, 1, 1]} : vector<18x18x4xf32> to vector<16x16x4xf32>
    %66 = vector.shape_cast %64 : vector<1x4xf32> to vector<1x1x4xf32>
    %67 = vector.broadcast %66 : vector<1x1x4xf32> to vector<16x16x4xf32>
    %68 = arith.mulf %67, %65 : vector<16x16x4xf32>
    %69 = arith.addf %62, %68 : vector<16x16x4xf32>
    %70 = vector.broadcast %7 : vector<1x1x4xf32> to vector<16x16x4xf32>
    %71 = arith.addf %69, %70 : vector<16x16x4xf32>
    %c0_17 = arith.constant 0 : index
    %c0_18 = arith.constant 0 : index
    %c0_19 = arith.constant 0 : index
    %c0_20 = arith.constant 0 : index
    %72 = vector.load %arg5[%c0_17, %c0_18, %c0_19, %c0_20] : memref<1x16x16x4xf32, #tpu.memory_space<vmem>>, vector<1x16x16x4xf32>
    %73 = vector.shape_cast %72 : vector<1x16x16x4xf32> to vector<16x16x4xf32>
    %74 = vector.shape_cast %71 : vector<16x16x4xf32> to vector<1x16x16x4xf32>
    tpu.vector_store %arg5[%c0_17, %c0_18, %c0_19, %c0_20], %74 {strides = array<i32>} : memref<1x16x16x4xf32, #tpu.memory_space<vmem>>, vector<1x16x16x4xf32>,
    return
  }
  func.func @transform_0(%arg0: i32, %arg1: i32) -> (i32, i32, i32, i32) {
    %c0_i32 = arith.constant 0 : i32
    %c0_i32_0 = arith.constant 0 : i32
    %c0_i32_1 = arith.constant 0 : i32
    return %arg1, %c0_i32, %c0_i32_0, %arg0 : i32, i32, i32, i32
  }
  func.func @transform_1(%arg0: i32, %arg1: i32) -> (i32, i32, i32) {
    %c0_i32 = arith.constant 0 : i32
    %c0_i32_0 = arith.constant 0 : i32
    %c0_i32_1 = arith.constant 0 : i32
    return %c0_i32, %c0_i32_0, %arg0 : i32, i32, i32
  }
  func.func @transform_2(%arg0: i32, %arg1: i32) -> (i32, i32, i32) {
    %c0_i32 = arith.constant 0 : i32
    %c0_i32_0 = arith.constant 0 : i32
    %c0_i32_1 = arith.constant 0 : i32
    return %c0_i32, %c0_i32_0, %arg0 : i32, i32, i32
  }
  func.func @transform_3(%arg0: i32, %arg1: i32) -> (i32, i32, i32, i32) {
    %c0_i32 = arith.constant 0 : i32
    %c0_i32_0 = arith.constant 0 : i32
    %c0_i32_1 = arith.constant 0 : i32
    return %arg1, %c0_i32, %c0_i32_0, %arg0 : i32, i32, i32, i32
  }
}

</mosaic_0001>

<llo_original>
// kernel: tpu_custom_call.1
$region0: #{tpu_custom_call.1}
  #allocation0 [shape = 'u32[]', space=smem, size = 0x4, offset = 0x4, fixed_abs, tag = 'smem constant byte address 0x4 - core index']
  #allocation1 [shape = 'u32[144,128]{1,0:T(1,128)}', space=vmem, size = 0x12000, scoped, tag = 'internal scratch']
  #allocation2 [shape = 'f32[18,18,4]{2,1,0:T(8,128)}', space=vmem, size = 0x36000, scoped, tag = 'scratch operand']
  %s0 = inlined_call_operand.vmem [shape: f32[2,16,16,4], index: 0, kind: input, shape index: {}]
  %s1 = inlined_call_operand.vmem [shape: f32[9,1,4], index: 1, kind: input, shape index: {}]
  %s2 = inlined_call_operand.vmem [shape: f32[1,1,4], index: 2, kind: input, shape index: {}]
  %s3 = inlined_call_operand.vmem [shape: f32[2,16,16,4], index: 3, kind: output, shape index: {}]
  %s4 = sld [smem:[#allocation0]]
  $region45: #{tpu_custom_call.1} parent=0
    _
  %s6 = ssub.s32 1, %s4
  %s7 = scalar_select 0, %s6, %s4
  loop: start=0, step=1, limit=4
  $region2: #{tpu_custom_call.1} parent=0 // loop_pre_header
    _
  $region3: #{tpu_custom_call.1} parent=0 // loop_header
    %s9 = sphi 0, %s13
    %p10 = scmp.ge.s32.totalorder %s9, 4
    %s16 = sphi 0, %s28
    %s17 = sphi 0, %s24
    %s18 = sphi 0, %s16
    %s19 = sphi 0, %s17
    %s20 = sphi 0, %s18
    %s21 = sphi 0, %s19
    %s33 = sphi 0, %s35
    %s36 = sphi 0, %s33
    %s37 = sphi 0, %s36
    %s53 = sphi 0, %s37
    %s59 = sphi 0, %s61
    %s62 = sphi 0, %s59
    %s63 = sphi 0, %s62
    %s79 = sphi 0, %s63
    %s85 = sphi 0, %s87
    %s88 = sphi 0, %s85
    %s89 = sphi 0, %s88
    %s105 = sphi 0, %s89
    %s113 = sphi 0, %s115
    %s116 = sphi 0, %s113
    %s117 = sphi 0, %s116
    %s133 = sphi 0, %s117
  $region4: #{tpu_custom_call.1} parent=0 // loop_header_branch
    %12 = sbr.rel (%p10) target = $region8
  $region5: #{tpu_custom_call.1} parent=0 // loop_body
    %s14 = ssub.s32 %s9, 1
    %s15 = ssub.s32 %s9, 2
    %s22 = sadd.s32 1, %s17
    %p23 = scmp.ge.s32.totalorder %s22, 2
    %s24 = scalar_select %p23, 0, %s22
    %s25 = sadd.s32 1, %s16
    %s26 = scalar_select %p23, %s25, %s16
    %p27 = scmp.ge.s32.totalorder %s26, 1
    %s28 = scalar_select %p27, 0, %s26
    %s29 = ssub.s32 %s17, %s24
    %s30 = ssub.s32 %s16, %s28
    %s31 = sor.u32 %s29, %s30
    %p32 = scmp.eq.s32.totalorder %s31, 0
    %s34 = sadd.s32 %s33, 1
    %s35 = scalar_select %p32, %s33, %s34
    %p38 = pneg %p32
    %p39 = scmp.eq.s32.totalorder %s9, 1
    %p40 = por %p38, %p39
    %p41 = scmp.ne.s32.totalorder %s33, %s36
    %p42 = scmp.eq.s32.totalorder %s9, 0
    %p43 = por %p41, %p42
    %p44 = scmp.ne.s32.totalorder %s33, %s36
    %p45 = scmp.eq.s32.totalorder %s14, 1
    %p46 = por %p44, %p45
    %p47 = scmp.ne.s32.totalorder %s36, %s37
    %p48 = scmp.eq.s32.totalorder %s14, 0
    %p49 = por %p47, %p48
    %p50 = scmp.ne.s32.totalorder %s36, %s37
    %p51 = scmp.eq.s32.totalorder %s15, 1
    %p52 = por %p50, %p51
    %p54 = scmp.ne.s32.totalorder %s37, %s53
    %p55 = scmp.eq.s32.totalorder %s15, 0
    %p56 = por %p54, %p55
    %s57 = ssub.s32 %s16, %s28
    %p58 = scmp.eq.s32.totalorder %s57, 0
    %s60 = sadd.s32 %s59, 1
    %s61 = scalar_select %p58, %s59, %s60
    %p64 = pneg %p58
    %p65 = scmp.eq.s32.totalorder %s9, 1
    %p66 = por %p64, %p65
    %p67 = scmp.ne.s32.totalorder %s59, %s62
    %p68 = scmp.eq.s32.totalorder %s9, 0
    %p69 = por %p67, %p68
    %p70 = scmp.ne.s32.totalorder %s59, %s62
    %p71 = scmp.eq.s32.totalorder %s14, 1
    %p72 = por %p70, %p71
    %p73 = scmp.ne.s32.totalorder %s62, %s63
    %p74 = scmp.eq.s32.totalorder %s14, 0
    %p75 = por %p73, %p74
    %p76 = scmp.ne.s32.totalorder %s62, %s63
    %p77 = scmp.eq.s32.totalorder %s15, 1
    %p78 = por %p76, %p77
    %p80 = scmp.ne.s32.totalorder %s63, %s79
    %p81 = scmp.eq.s32.totalorder %s15, 0
    %p82 = por %p80, %p81
    %s83 = ssub.s32 %s16, %s28
    %p84 = scmp.eq.s32.totalorder %s83, 0
    %s86 = sadd.s32 %s85, 1
    %s87 = scalar_select %p84, %s85, %s86
    %p90 = pneg %p84
    %p91 = scmp.eq.s32.totalorder %s9, 1
    %p92 = por %p90, %p91
    %p93 = scmp.ne.s32.totalorder %s85, %s88
    %p94 = scmp.eq.s32.totalorder %s9, 0
    %p95 = por %p93, %p94
    %p96 = scmp.ne.s32.totalorder %s85, %s88
    %p97 = scmp.eq.s32.totalorder %s14, 1
    %p98 = por %p96, %p97
    %p99 = scmp.ne.s32.totalorder %s88, %s89
    %p100 = scmp.eq.s32.totalorder %s14, 0
    %p101 = por %p99, %p100
    %p102 = scmp.ne.s32.totalorder %s88, %s89
    %p103 = scmp.eq.s32.totalorder %s15, 1
    %p104 = por %p102, %p103
    %p106 = scmp.ne.s32.totalorder %s89, %s105
    %p107 = scmp.eq.s32.totalorder %s15, 0
    %p108 = por %p106, %p107
    %s109 = ssub.s32 %s17, %s24
    %s110 = ssub.s32 %s16, %s28
    %s111 = sor.u32 %s109, %s110
    %p112 = scmp.eq.s32.totalorder %s111, 0
    %s114 = sadd.s32 %s113, 1
    %s115 = scalar_select %p112, %s113, %s114
    %p118 = pneg %p112
    %p119 = scmp.eq.s32.totalorder %s9, 1
    %p120 = por %p118, %p119
    %p121 = scmp.ne.s32.totalorder %s113, %s116
    %p122 = scmp.eq.s32.totalorder %s9, 0
    %p123 = por %p121, %p122
    %p124 = scmp.ne.s32.totalorder %s113, %s116
    %p125 = scmp.eq.s32.totalorder %s14, 1
    %p126 = por %p124, %p125
    %p127 = scmp.ne.s32.totalorder %s116, %s117
    %p128 = scmp.eq.s32.totalorder %s14, 0
    %p129 = por %p127, %p128
    %p130 = scmp.ne.s32.totalorder %s116, %s117
    %p131 = scmp.eq.s32.totalorder %s15, 1
    %p132 = por %p130, %p131
    %p134 = scmp.ne.s32.totalorder %s117, %s133
    %p135 = scmp.eq.s32.totalorder %s15, 0
    %p136 = por %p134, %p135
    %p137 = scmp.le.s32.totalorder 1, %s9
    %p138 = scmp.lt.s32.totalorder %s9, 3
    %p139 = pnand %p137, %p138
    %p140 = pneg %p139
    // Predicated region
    $region9: #{tpu_custom_call.1} parent=5 // pred_check
      _
    $region10: #{tpu_custom_call.1} parent=5 // pred_check_branch
      %142 = sbr.rel (%p139) target = $region12
    $region11: #{tpu_custom_call.1} parent=5 // pred_region
      %s143 = ssub.s32 %s9, 1
      // Predicated region
      $region13: #{tpu_custom_call.1} parent=11 // pred_check
        %p144 = pneg %p75
      $region14: #{tpu_custom_call.1} parent=11 // pred_check_branch
        %146 = sbr.rel (%p144) target = $region16
      $region15: #{tpu_custom_call.1} parent=11 // pred_region
        %p147 = scmp.lt.s32.totalorder %s18, 0
        %s148 = scalar_select %p147, %s18, 0
        %s149 = scalar_lea.vmem %s1, %s148
      $region16: #{tpu_custom_call.1} parent=11 // pred_fallthru
        _
      // Predicated region
      $region17: #{tpu_custom_call.1} parent=11 // pred_check
        %p150 = pneg %p101
      $region18: #{tpu_custom_call.1} parent=11 // pred_check_branch
        %152 = sbr.rel (%p150) target = $region20
      $region19: #{tpu_custom_call.1} parent=11 // pred_region
        %p153 = scmp.lt.s32.totalorder %s18, 0
        %s154 = scalar_select %p153, %s18, 0
        %s155 = scalar_lea.vmem %s2, %s154
      $region20: #{tpu_custom_call.1} parent=11 // pred_fallthru
        _
    $region12: #{tpu_custom_call.1} parent=5 // pred_fallthru
      _
    %p156 = scmp.lt.s32.totalorder %s9, 2
    // Predicated region
    $region21: #{tpu_custom_call.1} parent=5 // pred_check
      %p157 = pneg %p156
    $region22: #{tpu_custom_call.1} parent=5 // pred_check_branch
      %159 = sbr.rel (%p157) target = $region24
    $region23: #{tpu_custom_call.1} parent=5 // pred_region
      // Predicated region
      $region25: #{tpu_custom_call.1} parent=23 // pred_check
        %p160 = pneg %p43
      $region26: #{tpu_custom_call.1} parent=23 // pred_check_branch
        %162 = sbr.rel (%p160) target = $region28
      $region27: #{tpu_custom_call.1} parent=23 // pred_region
        %p163 = scmp.lt.s32.totalorder %s17, 1
        %s164 = scalar_select %p163, %s17, 1
        %p165 = scmp.lt.s32.totalorder %s16, 0
        %s166 = scalar_select %p165, %s16, 0
        %s167 = smul.addr %s164, 32
        %s168 = sadd.s32 %s166, %s167
        %s169 = smul.addr %s168, 8
        %s170 = scalar_lea.vmem %s0, %s169
      $region28: #{tpu_custom_call.1} parent=23 // pred_fallthru
        _
    $region24: #{tpu_custom_call.1} parent=5 // pred_fallthru
      _
    %p171 = scmp.le.s32.totalorder 1, %s9
    %p172 = scmp.lt.s32.totalorder %s9, 3
    %p173 = pnand %p171, %p172
    %p174 = pneg %p173
    // Predicated region
    $region29: #{tpu_custom_call.1} parent=5 // pred_check
      _
    $region30: #{tpu_custom_call.1} parent=5 // pred_check_branch
      %176 = sbr.rel (%p173) target = $region32
    $region31: #{tpu_custom_call.1} parent=5 // pred_region
      %s177 = ssub.s32 %s9, 1
      %p178 = scmp.lt.s32.totalorder %s19, 1
      %s179 = scalar_select %p178, %s19, 1
      %p180 = scmp.lt.s32.totalorder %s18, 0
      %s181 = scalar_select %p180, %s18, 0
      %s182 = smul.addr %s179, 32
      %s183 = sadd.s32 %s181, %s182
      %s184 = smul.addr %s183, 8
      %s185 = scalar_lea.vmem %s0, %s184
      %p186 = pneg %p49
      %p187 = pneg %p46
      %p188 = scmp.lt.s32.totalorder %s18, 0
      %s189 = scalar_select %p188, %s18, 0
      %s190 = scalar_lea.vmem %s1, %s189
      %p191 = pneg %p75
      %p192 = pneg %p72
      %p193 = scmp.lt.s32.totalorder %s18, 0
      %s194 = scalar_select %p193, %s18, 0
      %s195 = scalar_lea.vmem %s2, %s194
      %p196 = pneg %p101
      %p197 = pneg %p98
      %p198 = pneg %p129
      %p199 = pneg %p126
      %p200 = scmp.lt.s32.totalorder %s19, 1
      %s201 = scalar_select %p200, %s19, 1
      %p202 = scmp.lt.s32.totalorder %s18, 0
      %s203 = scalar_select %p202, %s18, 0
      %s204 = smul.addr %s201, 32
      %s205 = sadd.s32 %s203, %s204
      %s206 = smul.addr %s205, 8
      %s207 = scalar_lea.vmem %s3, %s206
      %p208 = scmp.lt.s32.totalorder %s19, 1
      %s209 = scalar_select %p208, %s19, 1
      %p210 = scmp.lt.s32.totalorder %s18, 0
      %s211 = scalar_select %p210, %s18, 0
      %s212 = smul.addr %s209, 32
      %s213 = sadd.s32 %s211, %s212
      %s214 = smul.addr %s213, 8
      %s215 = scalar_lea.vmem %s0, %s214
      %p216 = scmp.lt.s32.totalorder %s18, 0
      %s217 = scalar_select %p216, %s18, 0
      %s218 = scalar_lea.vmem %s1, %s217
      %p219 = scmp.lt.s32.totalorder %s18, 0
      %s220 = scalar_select %p219, %s18, 0
      %s221 = scalar_lea.vmem %s2, %s220
      %p222 = scmp.lt.s32.totalorder %s19, 1
      %s223 = scalar_select %p222, %s19, 1
      %p224 = scmp.lt.s32.totalorder %s18, 0
      %s225 = scalar_select %p224, %s18, 0
      %s226 = smul.addr %s223, 32
      %s227 = sadd.s32 %s225, %s226
      %s228 = smul.addr %s227, 8
      %s229 = scalar_lea.vmem %s3, %s228
      %vm230 = vcmask 31744
      %231 = vst.msk [vmem:[#allocation2] sm:$0xff] %vm230, 0.0
      %232 = vst.msk [vmem:[#allocation2 + $0x8] sm:$0xff] %vm230, 0.0
      %vm233 = vcmask 25600
      %234 = vst.msk [vmem:[#allocation2 + $0x10] sm:$0x3] %vm233, 0.0
      %235 = vst.msk [vmem:[#allocation2 + $0x18] sm:$0xff] %vm230, 0.0
      %236 = vst.msk [vmem:[#allocation2 + $0x20] sm:$0xff] %vm230, 0.0
      %237 = vst.msk [vmem:[#allocation2 + $0x28] sm:$0x3] %vm233, 0.0
      %238 = vst.msk [vmem:[#allocation2 + $0x30] sm:$0xff] %vm230, 0.0
      %239 = vst.msk [vmem:[#allocation2 + $0x38] sm:$0xff] %vm230, 0.0
      %240 = vst.msk [vmem:[#allocation2 + $0x40] sm:$0x3] %vm233, 0.0
      %241 = vst.msk [vmem:[#allocation2 + $0x48] sm:$0xff] %vm230, 0.0
      %242 = vst.msk [vmem:[#allocation2 + $0x50] sm:$0xff] %vm230, 0.0
      %243 = vst.msk [vmem:[#allocation2 + $0x58] sm:$0x3] %vm233, 0.0
      %244 = vst.msk [vmem:[#allocation2 + $0x60] sm:$0xff] %vm230, 0.0
      %245 = vst.msk [vmem:[#allocation2 + $0x68] sm:$0xff] %vm230, 0.0
      %246 = vst.msk [vmem:[#allocation2 + $0x70] sm:$0x3] %vm233, 0.0
      %247 = vst.msk [vmem:[#allocation2 + $0x78] sm:$0xff] %vm230, 0.0
      %248 = vst.msk [vmem:[#allocation2 + $0x80] sm:$0xff] %vm230, 0.0
      %249 = vst.msk [vmem:[#allocation2 + $0x88] sm:$0x3] %vm233, 0.0
      %250 = vst.msk [vmem:[#allocation2 + $0x90] sm:$0xff] %vm230, 0.0
      %251 = vst.msk [vmem:[#allocation2 + $0x98] sm:$0xff] %vm230, 0.0
      %252 = vst.msk [vmem:[#allocation2 + $0xa0] sm:$0x3] %vm233, 0.0
      %253 = vst.msk [vmem:[#allocation2 + $0xa8] sm:$0xff] %vm230, 0.0
      %254 = vst.msk [vmem:[#allocation2 + $0xb0] sm:$0xff] %vm230, 0.0
      %255 = vst.msk [vmem:[#allocation2 + $0xb8] sm:$0x3] %vm233, 0.0
      %256 = vst.msk [vmem:[#allocation2 + $0xc0] sm:$0xff] %vm230, 0.0
      %257 = vst.msk [vmem:[#allocation2 + $0xc8] sm:$0xff] %vm230, 0.0
      %258 = vst.msk [vmem:[#allocation2 + $0xd0] sm:$0x3] %vm233, 0.0
      %259 = vst.msk [vmem:[#allocation2 + $0xd8] sm:$0xff] %vm230, 0.0
      %260 = vst.msk [vmem:[#allocation2 + $0xe0] sm:$0xff] %vm230, 0.0
      %261 = vst.msk [vmem:[#allocation2 + $0xe8] sm:$0x3] %vm233, 0.0
      %262 = vst.msk [vmem:[#allocation2 + $0xf0] sm:$0xff] %vm230, 0.0
      %263 = vst.msk [vmem:[#allocation2 + $0xf8] sm:$0xff] %vm230, 0.0
      %264 = vst.msk [vmem:[#allocation2 + $0x100] sm:$0x3] %vm233, 0.0
      %265 = vst.msk [vmem:[#allocation2 + $0x108] sm:$0xff] %vm230, 0.0
      %266 = vst.msk [vmem:[#allocation2 + $0x110] sm:$0xff] %vm230, 0.0
      %267 = vst.msk [vmem:[#allocation2 + $0x118] sm:$0x3] %vm233, 0.0
      %268 = vst.msk [vmem:[#allocation2 + $0x120] sm:$0xff] %vm230, 0.0
      %269 = vst.msk [vmem:[#allocation2 + $0x128] sm:$0xff] %vm230, 0.0
      %270 = vst.msk [vmem:[#allocation2 + $0x130] sm:$0x3] %vm233, 0.0
      %271 = vst.msk [vmem:[#allocation2 + $0x138] sm:$0xff] %vm230, 0.0
      %272 = vst.msk [vmem:[#allocation2 + $0x140] sm:$0xff] %vm230, 0.0
      %273 = vst.msk [vmem:[#allocation2 + $0x148] sm:$0x3] %vm233, 0.0
      %274 = vst.msk [vmem:[#allocation2 + $0x150] sm:$0xff] %vm230, 0.0
      %275 = vst.msk [vmem:[#allocation2 + $0x158] sm:$0xff] %vm230, 0.0
      %276 = vst.msk [vmem:[#allocation2 + $0x160] sm:$0x3] %vm233, 0.0
      %277 = vst.msk [vmem:[#allocation2 + $0x168] sm:$0xff] %vm230, 0.0
      %278 = vst.msk [vmem:[#allocation2 + $0x170] sm:$0xff] %vm230, 0.0
      %279 = vst.msk [vmem:[#allocation2 + $0x178] sm:$0x3] %vm233, 0.0
      %280 = vst.msk [vmem:[#allocation2 + $0x180] sm:$0xff] %vm230, 0.0
      %281 = vst.msk [vmem:[#allocation2 + $0x188] sm:$0xff] %vm230, 0.0
      %282 = vst.msk [vmem:[#allocation2 + $0x190] sm:$0x3] %vm233, 0.0
      %283 = vst.msk [vmem:[#allocation2 + $0x198] sm:$0xff] %vm230, 0.0
      %284 = vst.msk [vmem:[#allocation2 + $0x1a0] sm:$0xff] %vm230, 0.0
      %285 = vst.msk [vmem:[#allocation2 + $0x1a8] sm:$0x3] %vm233, 0.0
      %v286 = vld [vmem:[%s215] sm:$0xff]
      %v287 = vld [vmem:[%s215 + $0x8] sm:$0xff]
      %v288 = vld [vmem:[%s215 + $0x10] sm:$0xff]
      %v289 = vld [vmem:[%s215 + $0x18] sm:$0xff]
      %v290 = vld [vmem:[%s215 + $0x20] sm:$0xff]
      %v291 = vld [vmem:[%s215 + $0x28] sm:$0xff]
      %v292 = vld [vmem:[%s215 + $0x30] sm:$0xff]
      %v293 = vld [vmem:[%s215 + $0x38] sm:$0xff]
      %v294 = vld [vmem:[%s215 + $0x40] sm:$0xff]
      %v295 = vld [vmem:[%s215 + $0x48] sm:$0xff]
      %v296 = vld [vmem:[%s215 + $0x50] sm:$0xff]
      %v297 = vld [vmem:[%s215 + $0x58] sm:$0xff]
      %v298 = vld [vmem:[%s215 + $0x60] sm:$0xff]
      %v299 = vld [vmem:[%s215 + $0x68] sm:$0xff]
      %v300 = vld [vmem:[%s215 + $0x70] sm:$0xff]
      %v301 = vld [vmem:[%s215 + $0x78] sm:$0xff]
      %v302 = vld [vmem:[%s215 + $0x80] sm:$0xff]
      %v303 = vld [vmem:[%s215 + $0x88] sm:$0xff]
      %v304 = vld [vmem:[%s215 + $0x90] sm:$0xff]
      %v305 = vld [vmem:[%s215 + $0x98] sm:$0xff]
      %v306 = vld [vmem:[%s215 + $0xa0] sm:$0xff]
      %v307 = vld [vmem:[%s215 + $0xa8] sm:$0xff]
      %v308 = vld [vmem:[%s215 + $0xb0] sm:$0xff]
      %v309 = vld [vmem:[%s215 + $0xb8] sm:$0xff]
      %v310 = vld [vmem:[%s215 + $0xc0] sm:$0xff]
      %v311 = vld [vmem:[%s215 + $0xc8] sm:$0xff]
      %v312 = vld [vmem:[%s215 + $0xd0] sm:$0xff]
      %v313 = vld [vmem:[%s215 + $0xd8] sm:$0xff]
      %v314 = vld [vmem:[%s215 + $0xe0] sm:$0xff]
      %v315 = vld [vmem:[%s215 + $0xe8] sm:$0xff]
      %v316 = vld [vmem:[%s215 + $0xf0] sm:$0xff]
      %v317 = vld [vmem:[%s215 + $0xf8] sm:$0xff]
      %s318 = scalar_lea.vmem [#allocation2], 24
      %319 = vst.msk [vmem:[%s318 + $0x1] sm:$0xff] %vm230, %v286
      %320 = vst.msk [vmem:[%s318 + $0x9] sm:$0xff] %vm230, %v287
      %321 = vst.msk [vmem:[%s318 + $0x19] sm:$0xff] %vm230, %v288
      %322 = vst.msk [vmem:[%s318 + $0x21] sm:$0xff] %vm230, %v289
      %323 = vst.msk [vmem:[%s318 + $0x31] sm:$0xff] %vm230, %v290
      %324 = vst.msk [vmem:[%s318 + $0x39] sm:$0xff] %vm230, %v291
      %325 = vst.msk [vmem:[%s318 + $0x49] sm:$0xff] %vm230, %v292
      %326 = vst.msk [vmem:[%s318 + $0x51] sm:$0xff] %vm230, %v293
      %327 = vst.msk [vmem:[%s318 + $0x61] sm:$0xff] %vm230, %v294
      %328 = vst.msk [vmem:[%s318 + $0x69] sm:$0xff] %vm230, %v295
      %329 = vst.msk [vmem:[%s318 + $0x79] sm:$0xff] %vm230, %v296
      %330 = vst.msk [vmem:[%s318 + $0x81] sm:$0xff] %vm230, %v297
      %331 = vst.msk [vmem:[%s318 + $0x91] sm:$0xff] %vm230, %v298
      %332 = vst.msk [vmem:[%s318 + $0x99] sm:$0xff] %vm230, %v299
      %333 = vst.msk [vmem:[%s318 + $0xa9] sm:$0xff] %vm230, %v300
      %334 = vst.msk [vmem:[%s318 + $0xb1] sm:$0xff] %vm230, %v301
      %335 = vst.msk [vmem:[%s318 + $0xc1] sm:$0xff] %vm230, %v302
      %336 = vst.msk [vmem:[%s318 + $0xc9] sm:$0xff] %vm230, %v303
      %337 = vst.msk [vmem:[%s318 + $0xd9] sm:$0xff] %vm230, %v304
      %338 = vst.msk [vmem:[%s318 + $0xe1] sm:$0xff] %vm230, %v305
      %339 = vst.msk [vmem:[%s318 + $0xf1] sm:$0xff] %vm230, %v306
      %340 = vst.msk [vmem:[%s318 + $0xf9] sm:$0xff] %vm230, %v307
      %341 = vst.msk [vmem:[%s318 + $0x109] sm:$0xff] %vm230, %v308
      %342 = vst.msk [vmem:[%s318 + $0x111] sm:$0xff] %vm230, %v309
      %343 = vst.msk [vmem:[%s318 + $0x121] sm:$0xff] %vm230, %v310
      %344 = vst.msk [vmem:[%s318 + $0x129] sm:$0xff] %vm230, %v311
      %345 = vst.msk [vmem:[%s318 + $0x139] sm:$0xff] %vm230, %v312
      %346 = vst.msk [vmem:[%s318 + $0x141] sm:$0xff] %vm230, %v313
      %347 = vst.msk [vmem:[%s318 + $0x151] sm:$0xff] %vm230, %v314
      %348 = vst.msk [vmem:[%s318 + $0x159] sm:$0xff] %vm230, %v315
      %349 = vst.msk [vmem:[%s318 + $0x169] sm:$0xff] %vm230, %v316
      %350 = vst.msk [vmem:[%s318 + $0x171] sm:$0xff] %vm230, %v317
      %v351 = vld [vmem:[#allocation2] sm:$0xff]
      %v352 = vld [vmem:[#allocation2 + $0x8] sm:$0xff]
      %v353 = vld [vmem:[#allocation2 + $0x10] sm:$0x3]
      %v354 = vld [vmem:[#allocation2 + $0x18] sm:$0xff]
      %v355 = vld [vmem:[#allocation2 + $0x20] sm:$0xff]
      %v356 = vld [vmem:[#allocation2 + $0x28] sm:$0x3]
      %v357 = vld [vmem:[#allocation2 + $0x30] sm:$0xff]
      %v358 = vld [vmem:[#allocation2 + $0x38] sm:$0xff]
      %v359 = vld [vmem:[#allocation2 + $0x40] sm:$0x3]
      %v360 = vld [vmem:[#allocation2 + $0x48] sm:$0xff]
      %v361 = vld [vmem:[#allocation2 + $0x50] sm:$0xff]
      %v362 = vld [vmem:[#allocation2 + $0x58] sm:$0x3]
      %v363 = vld [vmem:[#allocation2 + $0x60] sm:$0xff]
      %v364 = vld [vmem:[#allocation2 + $0x68] sm:$0xff]
      %v365 = vld [vmem:[#allocation2 + $0x70] sm:$0x3]
      %v366 = vld [vmem:[#allocation2 + $0x78] sm:$0xff]
      %v367 = vld [vmem:[#allocation2 + $0x80] sm:$0xff]
      %v368 = vld [vmem:[#allocation2 + $0x88] sm:$0x3]
      %v369 = vld [vmem:[#allocation2 + $0x90] sm:$0xff]
      %v370 = vld [vmem:[#allocation2 + $0x98] sm:$0xff]
      %v371 = vld [vmem:[#allocation2 + $0xa0] sm:$0x3]
      %v372 = vld [vmem:[#allocation2 + $0xa8] sm:$0xff]
      %v373 = vld [vmem:[#allocation2 + $0xb0] sm:$0xff]
      %v374 = vld [vmem:[#allocation2 + $0xb8] sm:$0x3]
      %v375 = vld [vmem:[#allocation2 + $0xc0] sm:$0xff]
      %v376 = vld [vmem:[#allocation2 + $0xc8] sm:$0xff]
      %v377 = vld [vmem:[#allocation2 + $0xd0] sm:$0x3]
      %v378 = vld [vmem:[#allocation2 + $0xd8] sm:$0xff]
      %v379 = vld [vmem:[#allocation2 + $0xe0] sm:$0xff]
      %v380 = vld [vmem:[#allocation2 + $0xe8] sm:$0x3]
      %v381 = vld [vmem:[#allocation2 + $0xf0] sm:$0xff]
      %v382 = vld [vmem:[#allocation2 + $0xf8] sm:$0xff]
      %v383 = vld [vmem:[#allocation2 + $0x100] sm:$0x3]
      %v384 = vld [vmem:[#allocation2 + $0x108] sm:$0xff]
      %v385 = vld [vmem:[#allocation2 + $0x110] sm:$0xff]
      %v386 = vld [vmem:[#allocation2 + $0x118] sm:$0x3]
      %v387 = vld [vmem:[#allocation2 + $0x120] sm:$0xff]
      %v388 = vld [vmem:[#allocation2 + $0x128] sm:$0xff]
      %v389 = vld [vmem:[#allocation2 + $0x130] sm:$0x3]
      %v390 = vld [vmem:[#allocation2 + $0x138] sm:$0xff]
      %v391 = vld [vmem:[#allocation2 + $0x140] sm:$0xff]
      %v392 = vld [vmem:[#allocation2 + $0x148] sm:$0x3]
      %v393 = vld [vmem:[#allocation2 + $0x150] sm:$0xff]
      %v394 = vld [vmem:[#allocation2 + $0x158] sm:$0xff]
      %v395 = vld [vmem:[#allocation2 + $0x160] sm:$0x3]
      %v396 = vld [vmem:[#allocation2 + $0x168] sm:$0xff]
      %v397 = vld [vmem:[#allocation2 + $0x170] sm:$0xff]
      %v398 = vld [vmem:[#allocation2 + $0x178] sm:$0x3]
      %v399 = vld [vmem:[#allocation2 + $0x180] sm:$0xff]
      %v400 = vld [vmem:[#allocation2 + $0x188] sm:$0xff]
      %v401 = vld [vmem:[#allocation2 + $0x190] sm:$0x3]
      %v402 = vld [vmem:[#allocation2 + $0x198] sm:$0xff]
      %v403 = vld [vmem:[#allocation2 + $0x1a0] sm:$0xff]
      %v404 = vld [vmem:[#allocation2 + $0x1a8] sm:$0x3]
      %v405 = vld [vmem:[%s218] sm:$0x1]
      %v406 = vld [vmem:[%s218 + $0x1] sm:$0x1]
      %v407 = vld [vmem:[%s218 + $0x2] sm:$0x1]
      %v408 = vld [vmem:[%s218 + $0x3] sm:$0x1]
      %v409 = vld [vmem:[%s218 + $0x4] sm:$0x1]
      %v410 = vld [vmem:[%s218 + $0x5] sm:$0x1]
      %v411 = vld [vmem:[%s218 + $0x6] sm:$0x1]
      %v412 = vld [vmem:[%s218 + $0x7] sm:$0x1]
      %v413 = vld [vmem:[%s218 + $0x8] sm:$0x1]
      %v414 = vld [vmem:[%s221] sm:$0x1]
      %v416 = vlaneseq
      %v417 = vshrl.u32 %v416, 7
      %v418 = vsub.s32 0, %v417
      %v419 = vrot.slane %v405, %v418
      %v421 = vmul.f32 %v419, %v351
      %v422 = vmul.f32 %v419, %v352
      %v423 = vmul.f32 %v419, %v354
      %v424 = vmul.f32 %v419, %v355
      %v425 = vmul.f32 %v419, %v357
      %v426 = vmul.f32 %v419, %v358
      %v427 = vmul.f32 %v419, %v360
      %v428 = vmul.f32 %v419, %v361
      %v429 = vmul.f32 %v419, %v363
      %v430 = vmul.f32 %v419, %v364
      %v431 = vmul.f32 %v419, %v366
      %v432 = vmul.f32 %v419, %v367
      %v433 = vmul.f32 %v419, %v369
      %v434 = vmul.f32 %v419, %v370
      %v435 = vmul.f32 %v419, %v372
      %v436 = vmul.f32 %v419, %v373
      %v437 = vmul.f32 %v419, %v375
      %v438 = vmul.f32 %v419, %v376
      %v439 = vmul.f32 %v419, %v378
      %v440 = vmul.f32 %v419, %v379
      %v441 = vmul.f32 %v419, %v381
      %v442 = vmul.f32 %v419, %v382
      %v443 = vmul.f32 %v419, %v384
      %v444 = vmul.f32 %v419, %v385
      %v445 = vmul.f32 %v419, %v387
      %v446 = vmul.f32 %v419, %v388
      %v447 = vmul.f32 %v419, %v390
      %v448 = vmul.f32 %v419, %v391
      %v449 = vmul.f32 %v419, %v393
      %v450 = vmul.f32 %v419, %v394
      %v451 = vmul.f32 %v419, %v396
      %v452 = vmul.f32 %v419, %v397
      %v454 = vlaneseq
      %v455 = vshrl.u32 %v454, 7
      %v456 = vsub.s32 0, %v455
      %v457 = vrot.slane %v406, %v456
      %v459 = vmul.f32 %v457, %v351
      %v460 = vmul.f32 %v457, %v352
      %v461 = vmul.f32 %v457, %v353
      %v462 = vmul.f32 %v457, %v354
      %v463 = vmul.f32 %v457, %v355
      %v464 = vmul.f32 %v457, %v356
      %v465 = vmul.f32 %v457, %v357
      %v466 = vmul.f32 %v457, %v358
      %v467 = vmul.f32 %v457, %v359
      %v468 = vmul.f32 %v457, %v360
      %v469 = vmul.f32 %v457, %v361
      %v470 = vmul.f32 %v457, %v362
      %v471 = vmul.f32 %v457, %v363
      %v472 = vmul.f32 %v457, %v364
      %v473 = vmul.f32 %v457, %v365
      %v474 = vmul.f32 %v457, %v366
      %v475 = vmul.f32 %v457, %v367
      %v476 = vmul.f32 %v457, %v368
      %v477 = vmul.f32 %v457, %v369
      %v478 = vmul.f32 %v457, %v370
      %v479 = vmul.f32 %v457, %v371
      %v480 = vmul.f32 %v457, %v372
      %v481 = vmul.f32 %v457, %v373
      %v482 = vmul.f32 %v457, %v374
      %v483 = vmul.f32 %v457, %v375
      %v484 = vmul.f32 %v457, %v376
      %v485 = vmul.f32 %v457, %v377
      %v486 = vmul.f32 %v457, %v378
      %v487 = vmul.f32 %v457, %v379
      %v488 = vmul.f32 %v457, %v380
      %v489 = vmul.f32 %v457, %v381
      %v490 = vmul.f32 %v457, %v382
      %v491 = vmul.f32 %v457, %v383
      %v492 = vmul.f32 %v457, %v384
      %v493 = vmul.f32 %v457, %v385
      %v494 = vmul.f32 %v457, %v386
      %v495 = vmul.f32 %v457, %v387
      %v496 = vmul.f32 %v457, %v388
      %v497 = vmul.f32 %v457, %v389
      %v498 = vmul.f32 %v457, %v390
      %v499 = vmul.f32 %v457, %v391
      %v500 = vmul.f32 %v457, %v392
      %v501 = vmul.f32 %v457, %v393
      %v502 = vmul.f32 %v457, %v394
      %v503 = vmul.f32 %v457, %v395
      %v504 = vmul.f32 %v457, %v396
      %v505 = vmul.f32 %v457, %v397
      %v506 = vmul.f32 %v457, %v398
      %vm555 = vcmask 1046528
      %v556 = vrot.slane %v459, 1
      %v557 = vrot.slane %v460, 1
      %v558 = vsel %vm555, %v556, %v557
      %v559 = vrot.slane %v461, 1
      %v560 = vsel %vm555, %v557, %v559
      %v561 = vrot.slane %v462, 1
      %v562 = vrot.slane %v463, 1
      %v563 = vsel %vm555, %v561, %v562
      %v564 = vrot.slane %v464, 1
      %v565 = vsel %vm555, %v562, %v564
      %v566 = vrot.slane %v465, 1
      %v567 = vrot.slane %v466, 1
      %v568 = vsel %vm555, %v566, %v567
      %v569 = vrot.slane %v467, 1
      %v570 = vsel %vm555, %v567, %v569
      %v571 = vrot.slane %v468, 1
      %v572 = vrot.slane %v469, 1
      %v573 = vsel %vm555, %v571, %v572
      %v574 = vrot.slane %v470, 1
      %v575 = vsel %vm555, %v572, %v574
      %v576 = vrot.slane %v471, 1
      %v577 = vrot.slane %v472, 1
      %v578 = vsel %vm555, %v576, %v577
      %v579 = vrot.slane %v473, 1
      %v580 = vsel %vm555, %v577, %v579
      %v581 = vrot.slane %v474, 1
      %v582 = vrot.slane %v475, 1
      %v583 = vsel %vm555, %v581, %v582
      %v584 = vrot.slane %v476, 1
      %v585 = vsel %vm555, %v582, %v584
      %v586 = vrot.slane %v477, 1
      %v587 = vrot.slane %v478, 1
      %v588 = vsel %vm555, %v586, %v587
      %v589 = vrot.slane %v479, 1
      %v590 = vsel %vm555, %v587, %v589
      %v591 = vrot.slane %v480, 1
      %v592 = vrot.slane %v481, 1
      %v593 = vsel %vm555, %v591, %v592
      %v594 = vrot.slane %v482, 1
      %v595 = vsel %vm555, %v592, %v594
      %v596 = vrot.slane %v483, 1
      %v597 = vrot.slane %v484, 1
      %v598 = vsel %vm555, %v596, %v597
      %v599 = vrot.slane %v485, 1
      %v600 = vsel %vm555, %v597, %v599
      %v601 = vrot.slane %v486, 1
      %v602 = vrot.slane %v487, 1
      %v603 = vsel %vm555, %v601, %v602
      %v604 = vrot.slane %v488, 1
      %v605 = vsel %vm555, %v602, %v604
      %v606 = vrot.slane %v489, 1
      %v607 = vrot.slane %v490, 1
      %v608 = vsel %vm555, %v606, %v607
      %v609 = vrot.slane %v491, 1
      %v610 = vsel %vm555, %v607, %v609
      %v611 = vrot.slane %v492, 1
      %v612 = vrot.slane %v493, 1
      %v613 = vsel %vm555, %v611, %v612
      %v614 = vrot.slane %v494, 1
      %v615 = vsel %vm555, %v612, %v614
      %v616 = vrot.slane %v495, 1
      %v617 = vrot.slane %v496, 1
      %v618 = vsel %vm555, %v616, %v617
      %v619 = vrot.slane %v497, 1
      %v620 = vsel %vm555, %v617, %v619
      %v621 = vrot.slane %v498, 1
      %v622 = vrot.slane %v499, 1
      %v623 = vsel %vm555, %v621, %v622
      %v624 = vrot.slane %v500, 1
      %v625 = vsel %vm555, %v622, %v624
      %v626 = vrot.slane %v501, 1
      %v627 = vrot.slane %v502, 1
      %v628 = vsel %vm555, %v626, %v627
      %v629 = vrot.slane %v503, 1
      %v630 = vsel %vm555, %v627, %v629
      %v631 = vrot.slane %v504, 1
      %v632 = vrot.slane %v505, 1
      %v633 = vsel %vm555, %v631, %v632
      %v634 = vrot.slane %v506, 1
      %v635 = vsel %vm555, %v632, %v634
      %v668 = vadd.f32 %v421, %v558
      %v669 = vadd.f32 %v422, %v560
      %v670 = vadd.f32 %v423, %v563
      %v671 = vadd.f32 %v424, %v565
      %v672 = vadd.f32 %v425, %v568
      %v673 = vadd.f32 %v426, %v570
      %v674 = vadd.f32 %v427, %v573
      %v675 = vadd.f32 %v428, %v575
      %v676 = vadd.f32 %v429, %v578
      %v677 = vadd.f32 %v430, %v580
      %v678 = vadd.f32 %v431, %v583
      %v679 = vadd.f32 %v432, %v585
      %v680 = vadd.f32 %v433, %v588
      %v681 = vadd.f32 %v434, %v590
      %v682 = vadd.f32 %v435, %v593
      %v683 = vadd.f32 %v436, %v595
      %v684 = vadd.f32 %v437, %v598
      %v685 = vadd.f32 %v438, %v600
      %v686 = vadd.f32 %v439, %v603
      %v687 = vadd.f32 %v440, %v605
      %v688 = vadd.f32 %v441, %v608
      %v689 = vadd.f32 %v442, %v610
      %v690 = vadd.f32 %v443, %v613
      %v691 = vadd.f32 %v444, %v615
      %v692 = vadd.f32 %v445, %v618
      %v693 = vadd.f32 %v446, %v620
      %v694 = vadd.f32 %v447, %v623
      %v695 = vadd.f32 %v448, %v625
      %v696 = vadd.f32 %v449, %v628
      %v697 = vadd.f32 %v450, %v630
      %v698 = vadd.f32 %v451, %v633
      %v699 = vadd.f32 %v452, %v635
      %v701 = vlaneseq
      %v702 = vshrl.u32 %v701, 7
      %v703 = vsub.s32 0, %v702
      %v704 = vrot.slane %v407, %v703
      %v706 = vmul.f32 %v704, %v351
      %v707 = vmul.f32 %v704, %v352
      %v708 = vmul.f32 %v704, %v353
      %v709 = vmul.f32 %v704, %v354
      %v710 = vmul.f32 %v704, %v355
      %v711 = vmul.f32 %v704, %v356
      %v712 = vmul.f32 %v704, %v357
      %v713 = vmul.f32 %v704, %v358
      %v714 = vmul.f32 %v704, %v359
      %v715 = vmul.f32 %v704, %v360
      %v716 = vmul.f32 %v704, %v361
      %v717 = vmul.f32 %v704, %v362
      %v718 = vmul.f32 %v704, %v363
      %v719 = vmul.f32 %v704, %v364
      %v720 = vmul.f32 %v704, %v365
      %v721 = vmul.f32 %v704, %v366
      %v722 = vmul.f32 %v704, %v367
      %v723 = vmul.f32 %v704, %v368
      %v724 = vmul.f32 %v704, %v369
      %v725 = vmul.f32 %v704, %v370
      %v726 = vmul.f32 %v704, %v371
      %v727 = vmul.f32 %v704, %v372
      %v728 = vmul.f32 %v704, %v373
      %v729 = vmul.f32 %v704, %v374
      %v730 = vmul.f32 %v704, %v375
      %v731 = vmul.f32 %v704, %v376
      %v732 = vmul.f32 %v704, %v377
      %v733 = vmul.f32 %v704, %v378
      %v734 = vmul.f32 %v704, %v379
      %v735 = vmul.f32 %v704, %v380
      %v736 = vmul.f32 %v704, %v381
      %v737 = vmul.f32 %v704, %v382
      %v738 = vmul.f32 %v704, %v383
      %v739 = vmul.f32 %v704, %v384
      %v740 = vmul.f32 %v704, %v385
      %v741 = vmul.f32 %v704, %v386
      %v742 = vmul.f32 %v704, %v387
      %v743 = vmul.f32 %v704, %v388
      %v744 = vmul.f32 %v704, %v389
      %v745 = vmul.f32 %v704, %v390
      %v746 = vmul.f32 %v704, %v391
      %v747 = vmul.f32 %v704, %v392
      %v748 = vmul.f32 %v704, %v393
      %v749 = vmul.f32 %v704, %v394
      %v750 = vmul.f32 %v704, %v395
      %v751 = vmul.f32 %v704, %v396
      %v752 = vmul.f32 %v704, %v397
      %v753 = vmul.f32 %v704, %v398
      %vm802 = vcmask 1045504
      %v803 = vrot.slane %v706, 2
      %v804 = vrot.slane %v707, 2
      %v805 = vsel %vm802, %v803, %v804
      %v806 = vrot.slane %v708, 2
      %v807 = vsel %vm802, %v804, %v806
      %v808 = vrot.slane %v709, 2
      %v809 = vrot.slane %v710, 2
      %v810 = vsel %vm802, %v808, %v809
      %v811 = vrot.slane %v711, 2
      %v812 = vsel %vm802, %v809, %v811
      %v813 = vrot.slane %v712, 2
      %v814 = vrot.slane %v713, 2
      %v815 = vsel %vm802, %v813, %v814
      %v816 = vrot.slane %v714, 2
      %v817 = vsel %vm802, %v814, %v816
      %v818 = vrot.slane %v715, 2
      %v819 = vrot.slane %v716, 2
      %v820 = vsel %vm802, %v818, %v819
      %v821 = vrot.slane %v717, 2
      %v822 = vsel %vm802, %v819, %v821
      %v823 = vrot.slane %v718, 2
      %v824 = vrot.slane %v719, 2
      %v825 = vsel %vm802, %v823, %v824
      %v826 = vrot.slane %v720, 2
      %v827 = vsel %vm802, %v824, %v826
      %v828 = vrot.slane %v721, 2
      %v829 = vrot.slane %v722, 2
      %v830 = vsel %vm802, %v828, %v829
      %v831 = vrot.slane %v723, 2
      %v832 = vsel %vm802, %v829, %v831
      %v833 = vrot.slane %v724, 2
      %v834 = vrot.slane %v725, 2
      %v835 = vsel %vm802, %v833, %v834
      %v836 = vrot.slane %v726, 2
      %v837 = vsel %vm802, %v834, %v836
      %v838 = vrot.slane %v727, 2
      %v839 = vrot.slane %v728, 2
      %v840 = vsel %vm802, %v838, %v839
      %v841 = vrot.slane %v729, 2
      %v842 = vsel %vm802, %v839, %v841
      %v843 = vrot.slane %v730, 2
      %v844 = vrot.slane %v731, 2
      %v845 = vsel %vm802, %v843, %v844
      %v846 = vrot.slane %v732, 2
      %v847 = vsel %vm802, %v844, %v846
      %v848 = vrot.slane %v733, 2
      %v849 = vrot.slane %v734, 2
      %v850 = vsel %vm802, %v848, %v849
      %v851 = vrot.slane %v735, 2
      %v852 = vsel %vm802, %v849, %v851
      %v853 = vrot.slane %v736, 2
      %v854 = vrot.slane %v737, 2
      %v855 = vsel %vm802, %v853, %v854
      %v856 = vrot.slane %v738, 2
      %v857 = vsel %vm802, %v854, %v856
      %v858 = vrot.slane %v739, 2
      %v859 = vrot.slane %v740, 2
      %v860 = vsel %vm802, %v858, %v859
      %v861 = vrot.slane %v741, 2
      %v862 = vsel %vm802, %v859, %v861
      %v863 = vrot.slane %v742, 2
      %v864 = vrot.slane %v743, 2
      %v865 = vsel %vm802, %v863, %v864
      %v866 = vrot.slane %v744, 2
      %v867 = vsel %vm802, %v864, %v866
      %v868 = vrot.slane %v745, 2
      %v869 = vrot.slane %v746, 2
      %v870 = vsel %vm802, %v868, %v869
      %v871 = vrot.slane %v747, 2
      %v872 = vsel %vm802, %v869, %v871
      %v873 = vrot.slane %v748, 2
      %v874 = vrot.slane %v749, 2
      %v875 = vsel %vm802, %v873, %v874
      %v876 = vrot.slane %v750, 2
      %v877 = vsel %vm802, %v874, %v876
      %v878 = vrot.slane %v751, 2
      %v879 = vrot.slane %v752, 2
      %v880 = vsel %vm802, %v878, %v879
      %v881 = vrot.slane %v753, 2
      %v882 = vsel %vm802, %v879, %v881
      %v915 = vadd.f32 %v668, %v805
      %v916 = vadd.f32 %v669, %v807
      %v917 = vadd.f32 %v670, %v810
      %v918 = vadd.f32 %v671, %v812
      %v919 = vadd.f32 %v672, %v815
      %v920 = vadd.f32 %v673, %v817
      %v921 = vadd.f32 %v674, %v820
      %v922 = vadd.f32 %v675, %v822
      %v923 = vadd.f32 %v676, %v825
      %v924 = vadd.f32 %v677, %v827
      %v925 = vadd.f32 %v678, %v830
      %v926 = vadd.f32 %v679, %v832
      %v927 = vadd.f32 %v680, %v835
      %v928 = vadd.f32 %v681, %v837
      %v929 = vadd.f32 %v682, %v840
      %v930 = vadd.f32 %v683, %v842
      %v931 = vadd.f32 %v684, %v845
      %v932 = vadd.f32 %v685, %v847
      %v933 = vadd.f32 %v686, %v850
      %v934 = vadd.f32 %v687, %v852
      %v935 = vadd.f32 %v688, %v855
      %v936 = vadd.f32 %v689, %v857
      %v937 = vadd.f32 %v690, %v860
      %v938 = vadd.f32 %v691, %v862
      %v939 = vadd.f32 %v692, %v865
      %v940 = vadd.f32 %v693, %v867
      %v941 = vadd.f32 %v694, %v870
      %v942 = vadd.f32 %v695, %v872
      %v943 = vadd.f32 %v696, %v875
      %v944 = vadd.f32 %v697, %v877
      %v945 = vadd.f32 %v698, %v880
      %v946 = vadd.f32 %v699, %v882
      %v948 = vlaneseq
      %v949 = vshrl.u32 %v948, 7
      %v950 = vsub.s32 0, %v949
      %v951 = vrot.slane %v408, %v950
      %v953 = vmul.f32 %v951, %v354
      %v954 = vmul.f32 %v951, %v355
      %v955 = vmul.f32 %v951, %v357
      %v956 = vmul.f32 %v951, %v358
      %v957 = vmul.f32 %v951, %v360
      %v958 = vmul.f32 %v951, %v361
      %v959 = vmul.f32 %v951, %v363
      %v960 = vmul.f32 %v951, %v364
      %v961 = vmul.f32 %v951, %v366
      %v962 = vmul.f32 %v951, %v367
      %v963 = vmul.f32 %v951, %v369
      %v964 = vmul.f32 %v951, %v370
      %v965 = vmul.f32 %v951, %v372
      %v966 = vmul.f32 %v951, %v373
      %v967 = vmul.f32 %v951, %v375
      %v968 = vmul.f32 %v951, %v376
      %v969 = vmul.f32 %v951, %v378
      %v970 = vmul.f32 %v951, %v379
      %v971 = vmul.f32 %v951, %v381
      %v972 = vmul.f32 %v951, %v382
      %v973 = vmul.f32 %v951, %v384
      %v974 = vmul.f32 %v951, %v385
      %v975 = vmul.f32 %v951, %v387
      %v976 = vmul.f32 %v951, %v388
      %v977 = vmul.f32 %v951, %v390
      %v978 = vmul.f32 %v951, %v391
      %v979 = vmul.f32 %v951, %v393
      %v980 = vmul.f32 %v951, %v394
      %v981 = vmul.f32 %v951, %v396
      %v982 = vmul.f32 %v951, %v397
      %v983 = vmul.f32 %v951, %v399
      %v984 = vmul.f32 %v951, %v400
      %v985 = vadd.f32 %v915, %v953
      %v986 = vadd.f32 %v916, %v954
      %v987 = vadd.f32 %v917, %v955
      %v988 = vadd.f32 %v918, %v956
      %v989 = vadd.f32 %v919, %v957
      %v990 = vadd.f32 %v920, %v958
      %v991 = vadd.f32 %v921, %v959
      %v992 = vadd.f32 %v922, %v960
      %v993 = vadd.f32 %v923, %v961
      %v994 = vadd.f32 %v924, %v962
      %v995 = vadd.f32 %v925, %v963
      %v996 = vadd.f32 %v926, %v964
      %v997 = vadd.f32 %v927, %v965
      %v998 = vadd.f32 %v928, %v966
      %v999 = vadd.f32 %v929, %v967
      %v1000 = vadd.f32 %v930, %v968
      %v1001 = vadd.f32 %v931, %v969
      %v1002 = vadd.f32 %v932, %v970
      %v1003 = vadd.f32 %v933, %v971
      %v1004 = vadd.f32 %v934, %v972
      %v1005 = vadd.f32 %v935, %v973
      %v1006 = vadd.f32 %v936, %v974
      %v1007 = vadd.f32 %v937, %v975
      %v1008 = vadd.f32 %v938, %v976
      %v1009 = vadd.f32 %v939, %v977
      %v1010 = vadd.f32 %v940, %v978
      %v1011 = vadd.f32 %v941, %v979
      %v1012 = vadd.f32 %v942, %v980
      %v1013 = vadd.f32 %v943, %v981
      %v1014 = vadd.f32 %v944, %v982
      %v1015 = vadd.f32 %v945, %v983
      %v1016 = vadd.f32 %v946, %v984
      %v1018 = vlaneseq
      %v1019 = vshrl.u32 %v1018, 7
      %v1020 = vsub.s32 0, %v1019
      %v1021 = vrot.slane %v409, %v1020
      %v1023 = vmul.f32 %v1021, %v354
      %v1024 = vmul.f32 %v1021, %v355
      %v1025 = vmul.f32 %v1021, %v356
      %v1026 = vmul.f32 %v1021, %v357
      %v1027 = vmul.f32 %v1021, %v358
      %v1028 = vmul.f32 %v1021, %v359
      %v1029 = vmul.f32 %v1021, %v360
      %v1030 = vmul.f32 %v1021, %v361
      %v1031 = vmul.f32 %v1021, %v362
      %v1032 = vmul.f32 %v1021, %v363
      %v1033 = vmul.f32 %v1021, %v364
      %v1034 = vmul.f32 %v1021, %v365
      %v1035 = vmul.f32 %v1021, %v366
      %v1036 = vmul.f32 %v1021, %v367
      %v1037 = vmul.f32 %v1021, %v368
      %v1038 = vmul.f32 %v1021, %v369
      %v1039 = vmul.f32 %v1021, %v370
      %v1040 = vmul.f32 %v1021, %v371
      %v1041 = vmul.f32 %v1021, %v372
      %v1042 = vmul.f32 %v1021, %v373
      %v1043 = vmul.f32 %v1021, %v374
      %v1044 = vmul.f32 %v1021, %v375
      %v1045 = vmul.f32 %v1021, %v376
      %v1046 = vmul.f32 %v1021, %v377
      %v1047 = vmul.f32 %v1021, %v378
      %v1048 = vmul.f32 %v1021, %v379
      %v1049 = vmul.f32 %v1021, %v380
      %v1050 = vmul.f32 %v1021, %v381
      %v1051 = vmul.f32 %v1021, %v382
      %v1052 = vmul.f32 %v1021, %v383
      %v1053 = vmul.f32 %v1021, %v384
      %v1054 = vmul.f32 %v1021, %v385
      %v1055 = vmul.f32 %v1021, %v386
      %v1056 = vmul.f32 %v1021, %v387
      %v1057 = vmul.f32 %v1021, %v388
      %v1058 = vmul.f32 %v1021, %v389
      %v1059 = vmul.f32 %v1021, %v390
      %v1060 = vmul.f32 %v1021, %v391
      %v1061 = vmul.f32 %v1021, %v392
      %v1062 = vmul.f32 %v1021, %v393
      %v1063 = vmul.f32 %v1021, %v394
      %v1064 = vmul.f32 %v1021, %v395
      %v1065 = vmul.f32 %v1021, %v396
      %v1066 = vmul.f32 %v1021, %v397
      %v1067 = vmul.f32 %v1021, %v398
      %v1068 = vmul.f32 %v1021, %v399
      %v1069 = vmul.f32 %v1021, %v400
      %v1070 = vmul.f32 %v1021, %v401
      %v1119 = vrot.slane %v1023, 1
      %v1120 = vrot.slane %v1024, 1
      %v1121 = vsel %vm555, %v1119, %v1120
      %v1122 = vrot.slane %v1025, 1
      %v1123 = vsel %vm555, %v1120, %v1122
      %v1124 = vrot.slane %v1026, 1
      %v1125 = vrot.slane %v1027, 1
      %v1126 = vsel %vm555, %v1124, %v1125
      %v1127 = vrot.slane %v1028, 1
      %v1128 = vsel %vm555, %v1125, %v1127
      %v1129 = vrot.slane %v1029, 1
      %v1130 = vrot.slane %v1030, 1
      %v1131 = vsel %vm555, %v1129, %v1130
      %v1132 = vrot.slane %v1031, 1
      %v1133 = vsel %vm555, %v1130, %v1132
      %v1134 = vrot.slane %v1032, 1
      %v1135 = vrot.slane %v1033, 1
      %v1136 = vsel %vm555, %v1134, %v1135
      %v1137 = vrot.slane %v1034, 1
      %v1138 = vsel %vm555, %v1135, %v1137
      %v1139 = vrot.slane %v1035, 1
      %v1140 = vrot.slane %v1036, 1
      %v1141 = vsel %vm555, %v1139, %v1140
      %v1142 = vrot.slane %v1037, 1
      %v1143 = vsel %vm555, %v1140, %v1142
      %v1144 = vrot.slane %v1038, 1
      %v1145 = vrot.slane %v1039, 1
      %v1146 = vsel %vm555, %v1144, %v1145
      %v1147 = vrot.slane %v1040, 1
      %v1148 = vsel %vm555, %v1145, %v1147
      %v1149 = vrot.slane %v1041, 1
      %v1150 = vrot.slane %v1042, 1
      %v1151 = vsel %vm555, %v1149, %v1150
      %v1152 = vrot.slane %v1043, 1
      %v1153 = vsel %vm555, %v1150, %v1152
      %v1154 = vrot.slane %v1044, 1
      %v1155 = vrot.slane %v1045, 1
      %v1156 = vsel %vm555, %v1154, %v1155
      %v1157 = vrot.slane %v1046, 1
      %v1158 = vsel %vm555, %v1155, %v1157
      %v1159 = vrot.slane %v1047, 1
      %v1160 = vrot.slane %v1048, 1
      %v1161 = vsel %vm555, %v1159, %v1160
      %v1162 = vrot.slane %v1049, 1
      %v1163 = vsel %vm555, %v1160, %v1162
      %v1164 = vrot.slane %v1050, 1
      %v1165 = vrot.slane %v1051, 1
      %v1166 = vsel %vm555, %v1164, %v1165
      %v1167 = vrot.slane %v1052, 1
      %v1168 = vsel %vm555, %v1165, %v1167
      %v1169 = vrot.slane %v1053, 1
      %v1170 = vrot.slane %v1054, 1
      %v1171 = vsel %vm555, %v1169, %v1170
      %v1172 = vrot.slane %v1055, 1
      %v1173 = vsel %vm555, %v1170, %v1172
      %v1174 = vrot.slane %v1056, 1
      %v1175 = vrot.slane %v1057, 1
      %v1176 = vsel %vm555, %v1174, %v1175
      %v1177 = vrot.slane %v1058, 1
      %v1178 = vsel %vm555, %v1175, %v1177
      %v1179 = vrot.slane %v1059, 1
      %v1180 = vrot.slane %v1060, 1
      %v1181 = vsel %vm555, %v1179, %v1180
      %v1182 = vrot.slane %v1061, 1
      %v1183 = vsel %vm555, %v1180, %v1182
      %v1184 = vrot.slane %v1062, 1
      %v1185 = vrot.slane %v1063, 1
      %v1186 = vsel %vm555, %v1184, %v1185
      %v1187 = vrot.slane %v1064, 1
      %v1188 = vsel %vm555, %v1185, %v1187
      %v1189 = vrot.slane %v1065, 1
      %v1190 = vrot.slane %v1066, 1
      %v1191 = vsel %vm555, %v1189, %v1190
      %v1192 = vrot.slane %v1067, 1
      %v1193 = vsel %vm555, %v1190, %v1192
      %v1194 = vrot.slane %v1068, 1
      %v1195 = vrot.slane %v1069, 1
      %v1196 = vsel %vm555, %v1194, %v1195
      %v1197 = vrot.slane %v1070, 1
      %v1198 = vsel %vm555, %v1195, %v1197
      %v1231 = vadd.f32 %v985, %v1121
      %v1232 = vadd.f32 %v986, %v1123
      %v1233 = vadd.f32 %v987, %v1126
      %v1234 = vadd.f32 %v988, %v1128
      %v1235 = vadd.f32 %v989, %v1131
      %v1236 = vadd.f32 %v990, %v1133
      %v1237 = vadd.f32 %v991, %v1136
      %v1238 = vadd.f32 %v992, %v1138
      %v1239 = vadd.f32 %v993, %v1141
      %v1240 = vadd.f32 %v994, %v1143
      %v1241 = vadd.f32 %v995, %v1146
      %v1242 = vadd.f32 %v996, %v1148
      %v1243 = vadd.f32 %v997, %v1151
      %v1244 = vadd.f32 %v998, %v1153
      %v1245 = vadd.f32 %v999, %v1156
      %v1246 = vadd.f32 %v1000, %v1158
      %v1247 = vadd.f32 %v1001, %v1161
      %v1248 = vadd.f32 %v1002, %v1163
      %v1249 = vadd.f32 %v1003, %v1166
      %v1250 = vadd.f32 %v1004, %v1168
      %v1251 = vadd.f32 %v1005, %v1171
      %v1252 = vadd.f32 %v1006, %v1173
      %v1253 = vadd.f32 %v1007, %v1176
      %v1254 = vadd.f32 %v1008, %v1178
      %v1255 = vadd.f32 %v1009, %v1181
      %v1256 = vadd.f32 %v1010, %v1183
      %v1257 = vadd.f32 %v1011, %v1186
      %v1258 = vadd.f32 %v1012, %v1188
      %v1259 = vadd.f32 %v1013, %v1191
      %v1260 = vadd.f32 %v1014, %v1193
      %v1261 = vadd.f32 %v1015, %v1196
      %v1262 = vadd.f32 %v1016, %v1198
      %v1264 = vlaneseq
      %v1265 = vshrl.u32 %v1264, 7
      %v1266 = vsub.s32 0, %v1265
      %v1267 = vrot.slane %v410, %v1266
      %v1269 = vmul.f32 %v1267, %v354
      %v1270 = vmul.f32 %v1267, %v355
      %v1271 = vmul.f32 %v1267, %v356
      %v1272 = vmul.f32 %v1267, %v357
      %v1273 = vmul.f32 %v1267, %v358
      %v1274 = vmul.f32 %v1267, %v359
      %v1275 = vmul.f32 %v1267, %v360
      %v1276 = vmul.f32 %v1267, %v361
      %v1277 = vmul.f32 %v1267, %v362
      %v1278 = vmul.f32 %v1267, %v363
      %v1279 = vmul.f32 %v1267, %v364
      %v1280 = vmul.f32 %v1267, %v365
      %v1281 = vmul.f32 %v1267, %v366
      %v1282 = vmul.f32 %v1267, %v367
      %v1283 = vmul.f32 %v1267, %v368
      %v1284 = vmul.f32 %v1267, %v369
      %v1285 = vmul.f32 %v1267, %v370
      %v1286 = vmul.f32 %v1267, %v371
      %v1287 = vmul.f32 %v1267, %v372
      %v1288 = vmul.f32 %v1267, %v373
      %v1289 = vmul.f32 %v1267, %v374
      %v1290 = vmul.f32 %v1267, %v375
      %v1291 = vmul.f32 %v1267, %v376
      %v1292 = vmul.f32 %v1267, %v377
      %v1293 = vmul.f32 %v1267, %v378
      %v1294 = vmul.f32 %v1267, %v379
      %v1295 = vmul.f32 %v1267, %v380
      %v1296 = vmul.f32 %v1267, %v381
      %v1297 = vmul.f32 %v1267, %v382
      %v1298 = vmul.f32 %v1267, %v383
      %v1299 = vmul.f32 %v1267, %v384
      %v1300 = vmul.f32 %v1267, %v385
      %v1301 = vmul.f32 %v1267, %v386
      %v1302 = vmul.f32 %v1267, %v387
      %v1303 = vmul.f32 %v1267, %v388
      %v1304 = vmul.f32 %v1267, %v389
      %v1305 = vmul.f32 %v1267, %v390
      %v1306 = vmul.f32 %v1267, %v391
      %v1307 = vmul.f32 %v1267, %v392
      %v1308 = vmul.f32 %v1267, %v393
      %v1309 = vmul.f32 %v1267, %v394
      %v1310 = vmul.f32 %v1267, %v395
      %v1311 = vmul.f32 %v1267, %v396
      %v1312 = vmul.f32 %v1267, %v397
      %v1313 = vmul.f32 %v1267, %v398
      %v1314 = vmul.f32 %v1267, %v399
      %v1315 = vmul.f32 %v1267, %v400
      %v1316 = vmul.f32 %v1267, %v401
      %v1365 = vrot.slane %v1269, 2
      %v1366 = vrot.slane %v1270, 2
      %v1367 = vsel %vm802, %v1365, %v1366
      %v1368 = vrot.slane %v1271, 2
      %v1369 = vsel %vm802, %v1366, %v1368
      %v1370 = vrot.slane %v1272, 2
      %v1371 = vrot.slane %v1273, 2
      %v1372 = vsel %vm802, %v1370, %v1371
      %v1373 = vrot.slane %v1274, 2
      %v1374 = vsel %vm802, %v1371, %v1373
      %v1375 = vrot.slane %v1275, 2
      %v1376 = vrot.slane %v1276, 2
      %v1377 = vsel %vm802, %v1375, %v1376
      %v1378 = vrot.slane %v1277, 2
      %v1379 = vsel %vm802, %v1376, %v1378
      %v1380 = vrot.slane %v1278, 2
      %v1381 = vrot.slane %v1279, 2
      %v1382 = vsel %vm802, %v1380, %v1381
      %v1383 = vrot.slane %v1280, 2
      %v1384 = vsel %vm802, %v1381, %v1383
      %v1385 = vrot.slane %v1281, 2
      %v1386 = vrot.slane %v1282, 2
      %v1387 = vsel %vm802, %v1385, %v1386
      %v1388 = vrot.slane %v1283, 2
      %v1389 = vsel %vm802, %v1386, %v1388
      %v1390 = vrot.slane %v1284, 2
      %v1391 = vrot.slane %v1285, 2
      %v1392 = vsel %vm802, %v1390, %v1391
      %v1393 = vrot.slane %v1286, 2
      %v1394 = vsel %vm802, %v1391, %v1393
      %v1395 = vrot.slane %v1287, 2
      %v1396 = vrot.slane %v1288, 2
      %v1397 = vsel %vm802, %v1395, %v1396
      %v1398 = vrot.slane %v1289, 2
      %v1399 = vsel %vm802, %v1396, %v1398
      %v1400 = vrot.slane %v1290, 2
      %v1401 = vrot.slane %v1291, 2
      %v1402 = vsel %vm802, %v1400, %v1401
      %v1403 = vrot.slane %v1292, 2
      %v1404 = vsel %vm802, %v1401, %v1403
      %v1405 = vrot.slane %v1293, 2
      %v1406 = vrot.slane %v1294, 2
      %v1407 = vsel %vm802, %v1405, %v1406
      %v1408 = vrot.slane %v1295, 2
      %v1409 = vsel %vm802, %v1406, %v1408
      %v1410 = vrot.slane %v1296, 2
      %v1411 = vrot.slane %v1297, 2
      %v1412 = vsel %vm802, %v1410, %v1411
      %v1413 = vrot.slane %v1298, 2
      %v1414 = vsel %vm802, %v1411, %v1413
      %v1415 = vrot.slane %v1299, 2
      %v1416 = vrot.slane %v1300, 2
      %v1417 = vsel %vm802, %v1415, %v1416
      %v1418 = vrot.slane %v1301, 2
      %v1419 = vsel %vm802, %v1416, %v1418
      %v1420 = vrot.slane %v1302, 2
      %v1421 = vrot.slane %v1303, 2
      %v1422 = vsel %vm802, %v1420, %v1421
      %v1423 = vrot.slane %v1304, 2
      %v1424 = vsel %vm802, %v1421, %v1423
      %v1425 = vrot.slane %v1305, 2
      %v1426 = vrot.slane %v1306, 2
      %v1427 = vsel %vm802, %v1425, %v1426
      %v1428 = vrot.slane %v1307, 2
      %v1429 = vsel %vm802, %v1426, %v1428
      %v1430 = vrot.slane %v1308, 2
      %v1431 = vrot.slane %v1309, 2
      %v1432 = vsel %vm802, %v1430, %v1431
      %v1433 = vrot.slane %v1310, 2
      %v1434 = vsel %vm802, %v1431, %v1433
      %v1435 = vrot.slane %v1311, 2
      %v1436 = vrot.slane %v1312, 2
      %v1437 = vsel %vm802, %v1435, %v1436
      %v1438 = vrot.slane %v1313, 2
      %v1439 = vsel %vm802, %v1436, %v1438
      %v1440 = vrot.slane %v1314, 2
      %v1441 = vrot.slane %v1315, 2
      %v1442 = vsel %vm802, %v1440, %v1441
      %v1443 = vrot.slane %v1316, 2
      %v1444 = vsel %vm802, %v1441, %v1443
      %v1477 = vadd.f32 %v1231, %v1367
      %v1478 = vadd.f32 %v1232, %v1369
      %v1479 = vadd.f32 %v1233, %v1372
      %v1480 = vadd.f32 %v1234, %v1374
      %v1481 = vadd.f32 %v1235, %v1377
      %v1482 = vadd.f32 %v1236, %v1379
      %v1483 = vadd.f32 %v1237, %v1382
      %v1484 = vadd.f32 %v1238, %v1384
      %v1485 = vadd.f32 %v1239, %v1387
      %v1486 = vadd.f32 %v1240, %v1389
      %v1487 = vadd.f32 %v1241, %v1392
      %v1488 = vadd.f32 %v1242, %v1394
      %v1489 = vadd.f32 %v1243, %v1397
      %v1490 = vadd.f32 %v1244, %v1399
      %v1491 = vadd.f32 %v1245, %v1402
      %v1492 = vadd.f32 %v1246, %v1404
      %v1493 = vadd.f32 %v1247, %v1407
      %v1494 = vadd.f32 %v1248, %v1409
      %v1495 = vadd.f32 %v1249, %v1412
      %v1496 = vadd.f32 %v1250, %v1414
      %v1497 = vadd.f32 %v1251, %v1417
      %v1498 = vadd.f32 %v1252, %v1419
      %v1499 = vadd.f32 %v1253, %v1422
      %v1500 = vadd.f32 %v1254, %v1424
      %v1501 = vadd.f32 %v1255, %v1427
      %v1502 = vadd.f32 %v1256, %v1429
      %v1503 = vadd.f32 %v1257, %v1432
      %v1504 = vadd.f32 %v1258, %v1434
      %v1505 = vadd.f32 %v1259, %v1437
      %v1506 = vadd.f32 %v1260, %v1439
      %v1507 = vadd.f32 %v1261, %v1442
      %v1508 = vadd.f32 %v1262, %v1444
      %v1510 = vlaneseq
      %v1511 = vshrl.u32 %v1510, 7
      %v1512 = vsub.s32 0, %v1511
      %v1513 = vrot.slane %v411, %v1512
      %v1515 = vmul.f32 %v1513, %v357
      %v1516 = vmul.f32 %v1513, %v358
      %v1517 = vmul.f32 %v1513, %v360
      %v1518 = vmul.f32 %v1513, %v361
      %v1519 = vmul.f32 %v1513, %v363
      %v1520 = vmul.f32 %v1513, %v364
      %v1521 = vmul.f32 %v1513, %v366
      %v1522 = vmul.f32 %v1513, %v367
      %v1523 = vmul.f32 %v1513, %v369
      %v1524 = vmul.f32 %v1513, %v370
      %v1525 = vmul.f32 %v1513, %v372
      %v1526 = vmul.f32 %v1513, %v373
      %v1527 = vmul.f32 %v1513, %v375
      %v1528 = vmul.f32 %v1513, %v376
      %v1529 = vmul.f32 %v1513, %v378
      %v1530 = vmul.f32 %v1513, %v379
      %v1531 = vmul.f32 %v1513, %v381
      %v1532 = vmul.f32 %v1513, %v382
      %v1533 = vmul.f32 %v1513, %v384
      %v1534 = vmul.f32 %v1513, %v385
      %v1535 = vmul.f32 %v1513, %v387
      %v1536 = vmul.f32 %v1513, %v388
      %v1537 = vmul.f32 %v1513, %v390
      %v1538 = vmul.f32 %v1513, %v391
      %v1539 = vmul.f32 %v1513, %v393
      %v1540 = vmul.f32 %v1513, %v394
      %v1541 = vmul.f32 %v1513, %v396
      %v1542 = vmul.f32 %v1513, %v397
      %v1543 = vmul.f32 %v1513, %v399
      %v1544 = vmul.f32 %v1513, %v400
      %v1545 = vmul.f32 %v1513, %v402
      %v1546 = vmul.f32 %v1513, %v403
      %v1547 = vadd.f32 %v1477, %v1515
      %v1548 = vadd.f32 %v1478, %v1516
      %v1549 = vadd.f32 %v1479, %v1517
      %v1550 = vadd.f32 %v1480, %v1518
      %v1551 = vadd.f32 %v1481, %v1519
      %v1552 = vadd.f32 %v1482, %v1520
      %v1553 = vadd.f32 %v1483, %v1521
      %v1554 = vadd.f32 %v1484, %v1522
      %v1555 = vadd.f32 %v1485, %v1523
      %v1556 = vadd.f32 %v1486, %v1524
      %v1557 = vadd.f32 %v1487, %v1525
      %v1558 = vadd.f32 %v1488, %v1526
      %v1559 = vadd.f32 %v1489, %v1527
      %v1560 = vadd.f32 %v1490, %v1528
      %v1561 = vadd.f32 %v1491, %v1529
      %v1562 = vadd.f32 %v1492, %v1530
      %v1563 = vadd.f32 %v1493, %v1531
      %v1564 = vadd.f32 %v1494, %v1532
      %v1565 = vadd.f32 %v1495, %v1533
      %v1566 = vadd.f32 %v1496, %v1534
      %v1567 = vadd.f32 %v1497, %v1535
      %v1568 = vadd.f32 %v1498, %v1536
      %v1569 = vadd.f32 %v1499, %v1537
      %v1570 = vadd.f32 %v1500, %v1538
      %v1571 = vadd.f32 %v1501, %v1539
      %v1572 = vadd.f32 %v1502, %v1540
      %v1573 = vadd.f32 %v1503, %v1541
      %v1574 = vadd.f32 %v1504, %v1542
      %v1575 = vadd.f32 %v1505, %v1543
      %v1576 = vadd.f32 %v1506, %v1544
      %v1577 = vadd.f32 %v1507, %v1545
      %v1578 = vadd.f32 %v1508, %v1546
      %v1580 = vlaneseq
      %v1581 = vshrl.u32 %v1580, 7
      %v1582 = vsub.s32 0, %v1581
      %v1583 = vrot.slane %v412, %v1582
      %v1585 = vmul.f32 %v1583, %v357
      %v1586 = vmul.f32 %v1583, %v358
      %v1587 = vmul.f32 %v1583, %v359
      %v1588 = vmul.f32 %v1583, %v360
      %v1589 = vmul.f32 %v1583, %v361
      %v1590 = vmul.f32 %v1583, %v362
      %v1591 = vmul.f32 %v1583, %v363
      %v1592 = vmul.f32 %v1583, %v364
      %v1593 = vmul.f32 %v1583, %v365
      %v1594 = vmul.f32 %v1583, %v366
      %v1595 = vmul.f32 %v1583, %v367
      %v1596 = vmul.f32 %v1583, %v368
      %v1597 = vmul.f32 %v1583, %v369
      %v1598 = vmul.f32 %v1583, %v370
      %v1599 = vmul.f32 %v1583, %v371
      %v1600 = vmul.f32 %v1583, %v372
      %v1601 = vmul.f32 %v1583, %v373
      %v1602 = vmul.f32 %v1583, %v374
      %v1603 = vmul.f32 %v1583, %v375
      %v1604 = vmul.f32 %v1583, %v376
      %v1605 = vmul.f32 %v1583, %v377
      %v1606 = vmul.f32 %v1583, %v378
      %v1607 = vmul.f32 %v1583, %v379
      %v1608 = vmul.f32 %v1583, %v380
      %v1609 = vmul.f32 %v1583, %v381
      %v1610 = vmul.f32 %v1583, %v382
      %v1611 = vmul.f32 %v1583, %v383
      %v1612 = vmul.f32 %v1583, %v384
      %v1613 = vmul.f32 %v1583, %v385
      %v1614 = vmul.f32 %v1583, %v386
      %v1615 = vmul.f32 %v1583, %v387
      %v1616 = vmul.f32 %v1583, %v388
      %v1617 = vmul.f32 %v1583, %v389
      %v1618 = vmul.f32 %v1583, %v390
      %v1619 = vmul.f32 %v1583, %v391
      %v1620 = vmul.f32 %v1583, %v392
      %v1621 = vmul.f32 %v1583, %v393
      %v1622 = vmul.f32 %v1583, %v394
      %v1623 = vmul.f32 %v1583, %v395
      %v1624 = vmul.f32 %v1583, %v396
      %v1625 = vmul.f32 %v1583, %v397
      %v1626 = vmul.f32 %v1583, %v398
      %v1627 = vmul.f32 %v1583, %v399
      %v1628 = vmul.f32 %v1583, %v400
      %v1629 = vmul.f32 %v1583, %v401
      %v1630 = vmul.f32 %v1583, %v402
      %v1631 = vmul.f32 %v1583, %v403
      %v1632 = vmul.f32 %v1583, %v404
      %v1681 = vrot.slane %v1585, 1
      %v1682 = vrot.slane %v1586, 1
      %v1683 = vsel %vm555, %v1681, %v1682
      %v1684 = vrot.slane %v1587, 1
      %v1685 = vsel %vm555, %v1682, %v1684
      %v1686 = vrot.slane %v1588, 1
      %v1687 = vrot.slane %v1589, 1
      %v1688 = vsel %vm555, %v1686, %v1687
      %v1689 = vrot.slane %v1590, 1
      %v1690 = vsel %vm555, %v1687, %v1689
      %v1691 = vrot.slane %v1591, 1
      %v1692 = vrot.slane %v1592, 1
      %v1693 = vsel %vm555, %v1691, %v1692
      %v1694 = vrot.slane %v1593, 1
      %v1695 = vsel %vm555, %v1692, %v1694
      %v1696 = vrot.slane %v1594, 1
      %v1697 = vrot.slane %v1595, 1
      %v1698 = vsel %vm555, %v1696, %v1697
      %v1699 = vrot.slane %v1596, 1
      %v1700 = vsel %vm555, %v1697, %v1699
      %v1701 = vrot.slane %v1597, 1
      %v1702 = vrot.slane %v1598, 1
      %v1703 = vsel %vm555, %v1701, %v1702
      %v1704 = vrot.slane %v1599, 1
      %v1705 = vsel %vm555, %v1702, %v1704
      %v1706 = vrot.slane %v1600, 1
      %v1707 = vrot.slane %v1601, 1
      %v1708 = vsel %vm555, %v1706, %v1707
      %v1709 = vrot.slane %v1602, 1
      %v1710 = vsel %vm555, %v1707, %v1709
      %v1711 = vrot.slane %v1603, 1
      %v1712 = vrot.slane %v1604, 1
      %v1713 = vsel %vm555, %v1711, %v1712
      %v1714 = vrot.slane %v1605, 1
      %v1715 = vsel %vm555, %v1712, %v1714
      %v1716 = vrot.slane %v1606, 1
      %v1717 = vrot.slane %v1607, 1
      %v1718 = vsel %vm555, %v1716, %v1717
      %v1719 = vrot.slane %v1608, 1
      %v1720 = vsel %vm555, %v1717, %v1719
      %v1721 = vrot.slane %v1609, 1
      %v1722 = vrot.slane %v1610, 1
      %v1723 = vsel %vm555, %v1721, %v1722
      %v1724 = vrot.slane %v1611, 1
      %v1725 = vsel %vm555, %v1722, %v1724
      %v1726 = vrot.slane %v1612, 1
      %v1727 = vrot.slane %v1613, 1
      %v1728 = vsel %vm555, %v1726, %v1727
      %v1729 = vrot.slane %v1614, 1
      %v1730 = vsel %vm555, %v1727, %v1729
      %v1731 = vrot.slane %v1615, 1
      %v1732 = vrot.slane %v1616, 1
      %v1733 = vsel %vm555, %v1731, %v1732
      %v1734 = vrot.slane %v1617, 1
      %v1735 = vsel %vm555, %v1732, %v1734
      %v1736 = vrot.slane %v1618, 1
      %v1737 = vrot.slane %v1619, 1
      %v1738 = vsel %vm555, %v1736, %v1737
      %v1739 = vrot.slane %v1620, 1
      %v1740 = vsel %vm555, %v1737, %v1739
      %v1741 = vrot.slane %v1621, 1
      %v1742 = vrot.slane %v1622, 1
      %v1743 = vsel %vm555, %v1741, %v1742
      %v1744 = vrot.slane %v1623, 1
      %v1745 = vsel %vm555, %v1742, %v1744
      %v1746 = vrot.slane %v1624, 1
      %v1747 = vrot.slane %v1625, 1
      %v1748 = vsel %vm555, %v1746, %v1747
      %v1749 = vrot.slane %v1626, 1
      %v1750 = vsel %vm555, %v1747, %v1749
      %v1751 = vrot.slane %v1627, 1
      %v1752 = vrot.slane %v1628, 1
      %v1753 = vsel %vm555, %v1751, %v1752
      %v1754 = vrot.slane %v1629, 1
      %v1755 = vsel %vm555, %v1752, %v1754
      %v1756 = vrot.slane %v1630, 1
      %v1757 = vrot.slane %v1631, 1
      %v1758 = vsel %vm555, %v1756, %v1757
      %v1759 = vrot.slane %v1632, 1
      %v1760 = vsel %vm555, %v1757, %v1759
      %v1793 = vadd.f32 %v1547, %v1683
      %v1794 = vadd.f32 %v1548, %v1685
      %v1795 = vadd.f32 %v1549, %v1688
      %v1796 = vadd.f32 %v1550, %v1690
      %v1797 = vadd.f32 %v1551, %v1693
      %v1798 = vadd.f32 %v1552, %v1695
      %v1799 = vadd.f32 %v1553, %v1698
      %v1800 = vadd.f32 %v1554, %v1700
      %v1801 = vadd.f32 %v1555, %v1703
      %v1802 = vadd.f32 %v1556, %v1705
      %v1803 = vadd.f32 %v1557, %v1708
      %v1804 = vadd.f32 %v1558, %v1710
      %v1805 = vadd.f32 %v1559, %v1713
      %v1806 = vadd.f32 %v1560, %v1715
      %v1807 = vadd.f32 %v1561, %v1718
      %v1808 = vadd.f32 %v1562, %v1720
      %v1809 = vadd.f32 %v1563, %v1723
      %v1810 = vadd.f32 %v1564, %v1725
      %v1811 = vadd.f32 %v1565, %v1728
      %v1812 = vadd.f32 %v1566, %v1730
      %v1813 = vadd.f32 %v1567, %v1733
      %v1814 = vadd.f32 %v1568, %v1735
      %v1815 = vadd.f32 %v1569, %v1738
      %v1816 = vadd.f32 %v1570, %v1740
      %v1817 = vadd.f32 %v1571, %v1743
      %v1818 = vadd.f32 %v1572, %v1745
      %v1819 = vadd.f32 %v1573, %v1748
      %v1820 = vadd.f32 %v1574, %v1750
      %v1821 = vadd.f32 %v1575, %v1753
      %v1822 = vadd.f32 %v1576, %v1755
      %v1823 = vadd.f32 %v1577, %v1758
      %v1824 = vadd.f32 %v1578, %v1760
      %v1826 = vlaneseq
      %v1827 = vshrl.u32 %v1826, 7
      %v1828 = vsub.s32 0, %v1827
      %v1829 = vrot.slane %v413, %v1828
      %v1831 = vmul.f32 %v1829, %v357
      %v1832 = vmul.f32 %v1829, %v358
      %v1833 = vmul.f32 %v1829, %v359
      %v1834 = vmul.f32 %v1829, %v360
      %v1835 = vmul.f32 %v1829, %v361
      %v1836 = vmul.f32 %v1829, %v362
      %v1837 = vmul.f32 %v1829, %v363
      %v1838 = vmul.f32 %v1829, %v364
      %v1839 = vmul.f32 %v1829, %v365
      %v1840 = vmul.f32 %v1829, %v366
      %v1841 = vmul.f32 %v1829, %v367
      %v1842 = vmul.f32 %v1829, %v368
      %v1843 = vmul.f32 %v1829, %v369
      %v1844 = vmul.f32 %v1829, %v370
      %v1845 = vmul.f32 %v1829, %v371
      %v1846 = vmul.f32 %v1829, %v372
      %v1847 = vmul.f32 %v1829, %v373
      %v1848 = vmul.f32 %v1829, %v374
      %v1849 = vmul.f32 %v1829, %v375
      %v1850 = vmul.f32 %v1829, %v376
      %v1851 = vmul.f32 %v1829, %v377
      %v1852 = vmul.f32 %v1829, %v378
      %v1853 = vmul.f32 %v1829, %v379
      %v1854 = vmul.f32 %v1829, %v380
      %v1855 = vmul.f32 %v1829, %v381
      %v1856 = vmul.f32 %v1829, %v382
      %v1857 = vmul.f32 %v1829, %v383
      %v1858 = vmul.f32 %v1829, %v384
      %v1859 = vmul.f32 %v1829, %v385
      %v1860 = vmul.f32 %v1829, %v386
      %v1861 = vmul.f32 %v1829, %v387
      %v1862 = vmul.f32 %v1829, %v388
      %v1863 = vmul.f32 %v1829, %v389
      %v1864 = vmul.f32 %v1829, %v390
      %v1865 = vmul.f32 %v1829, %v391
      %v1866 = vmul.f32 %v1829, %v392
      %v1867 = vmul.f32 %v1829, %v393
      %v1868 = vmul.f32 %v1829, %v394
      %v1869 = vmul.f32 %v1829, %v395
      %v1870 = vmul.f32 %v1829, %v396
      %v1871 = vmul.f32 %v1829, %v397
      %v1872 = vmul.f32 %v1829, %v398
      %v1873 = vmul.f32 %v1829, %v399
      %v1874 = vmul.f32 %v1829, %v400
      %v1875 = vmul.f32 %v1829, %v401
      %v1876 = vmul.f32 %v1829, %v402
      %v1877 = vmul.f32 %v1829, %v403
      %v1878 = vmul.f32 %v1829, %v404
      %v1927 = vrot.slane %v1831, 2
      %v1928 = vrot.slane %v1832, 2
      %v1929 = vsel %vm802, %v1927, %v1928
      %v1930 = vrot.slane %v1833, 2
      %v1931 = vsel %vm802, %v1928, %v1930
      %v1932 = vrot.slane %v1834, 2
      %v1933 = vrot.slane %v1835, 2
      %v1934 = vsel %vm802, %v1932, %v1933
      %v1935 = vrot.slane %v1836, 2
      %v1936 = vsel %vm802, %v1933, %v1935
      %v1937 = vrot.slane %v1837, 2
      %v1938 = vrot.slane %v1838, 2
      %v1939 = vsel %vm802, %v1937, %v1938
      %v1940 = vrot.slane %v1839, 2
      %v1941 = vsel %vm802, %v1938, %v1940
      %v1942 = vrot.slane %v1840, 2
      %v1943 = vrot.slane %v1841, 2
      %v1944 = vsel %vm802, %v1942, %v1943
      %v1945 = vrot.slane %v1842, 2
      %v1946 = vsel %vm802, %v1943, %v1945
      %v1947 = vrot.slane %v1843, 2
      %v1948 = vrot.slane %v1844, 2
      %v1949 = vsel %vm802, %v1947, %v1948
      %v1950 = vrot.slane %v1845, 2
      %v1951 = vsel %vm802, %v1948, %v1950
      %v1952 = vrot.slane %v1846, 2
      %v1953 = vrot.slane %v1847, 2
      %v1954 = vsel %vm802, %v1952, %v1953
      %v1955 = vrot.slane %v1848, 2
      %v1956 = vsel %vm802, %v1953, %v1955
      %v1957 = vrot.slane %v1849, 2
      %v1958 = vrot.slane %v1850, 2
      %v1959 = vsel %vm802, %v1957, %v1958
      %v1960 = vrot.slane %v1851, 2
      %v1961 = vsel %vm802, %v1958, %v1960
      %v1962 = vrot.slane %v1852, 2
      %v1963 = vrot.slane %v1853, 2
      %v1964 = vsel %vm802, %v1962, %v1963
      %v1965 = vrot.slane %v1854, 2
      %v1966 = vsel %vm802, %v1963, %v1965
      %v1967 = vrot.slane %v1855, 2
      %v1968 = vrot.slane %v1856, 2
      %v1969 = vsel %vm802, %v1967, %v1968
      %v1970 = vrot.slane %v1857, 2
      %v1971 = vsel %vm802, %v1968, %v1970
      %v1972 = vrot.slane %v1858, 2
      %v1973 = vrot.slane %v1859, 2
      %v1974 = vsel %vm802, %v1972, %v1973
      %v1975 = vrot.slane %v1860, 2
      %v1976 = vsel %vm802, %v1973, %v1975
      %v1977 = vrot.slane %v1861, 2
      %v1978 = vrot.slane %v1862, 2
      %v1979 = vsel %vm802, %v1977, %v1978
      %v1980 = vrot.slane %v1863, 2
      %v1981 = vsel %vm802, %v1978, %v1980
      %v1982 = vrot.slane %v1864, 2
      %v1983 = vrot.slane %v1865, 2
      %v1984 = vsel %vm802, %v1982, %v1983
      %v1985 = vrot.slane %v1866, 2
      %v1986 = vsel %vm802, %v1983, %v1985
      %v1987 = vrot.slane %v1867, 2
      %v1988 = vrot.slane %v1868, 2
      %v1989 = vsel %vm802, %v1987, %v1988
      %v1990 = vrot.slane %v1869, 2
      %v1991 = vsel %vm802, %v1988, %v1990
      %v1992 = vrot.slane %v1870, 2
      %v1993 = vrot.slane %v1871, 2
      %v1994 = vsel %vm802, %v1992, %v1993
      %v1995 = vrot.slane %v1872, 2
      %v1996 = vsel %vm802, %v1993, %v1995
      %v1997 = vrot.slane %v1873, 2
      %v1998 = vrot.slane %v1874, 2
      %v1999 = vsel %vm802, %v1997, %v1998
      %v2000 = vrot.slane %v1875, 2
      %v2001 = vsel %vm802, %v1998, %v2000
      %v2002 = vrot.slane %v1876, 2
      %v2003 = vrot.slane %v1877, 2
      %v2004 = vsel %vm802, %v2002, %v2003
      %v2005 = vrot.slane %v1878, 2
      %v2006 = vsel %vm802, %v2003, %v2005
      %v2039 = vadd.f32 %v1793, %v1929
      %v2040 = vadd.f32 %v1794, %v1931
      %v2041 = vadd.f32 %v1795, %v1934
      %v2042 = vadd.f32 %v1796, %v1936
      %v2043 = vadd.f32 %v1797, %v1939
      %v2044 = vadd.f32 %v1798, %v1941
      %v2045 = vadd.f32 %v1799, %v1944
      %v2046 = vadd.f32 %v1800, %v1946
      %v2047 = vadd.f32 %v1801, %v1949
      %v2048 = vadd.f32 %v1802, %v1951
      %v2049 = vadd.f32 %v1803, %v1954
      %v2050 = vadd.f32 %v1804, %v1956
      %v2051 = vadd.f32 %v1805, %v1959
      %v2052 = vadd.f32 %v1806, %v1961
      %v2053 = vadd.f32 %v1807, %v1964
      %v2054 = vadd.f32 %v1808, %v1966
      %v2055 = vadd.f32 %v1809, %v1969
      %v2056 = vadd.f32 %v1810, %v1971
      %v2057 = vadd.f32 %v1811, %v1974
      %v2058 = vadd.f32 %v1812, %v1976
      %v2059 = vadd.f32 %v1813, %v1979
      %v2060 = vadd.f32 %v1814, %v1981
      %v2061 = vadd.f32 %v1815, %v1984
      %v2062 = vadd.f32 %v1816, %v1986
      %v2063 = vadd.f32 %v1817, %v1989
      %v2064 = vadd.f32 %v1818, %v1991
      %v2065 = vadd.f32 %v1819, %v1994
      %v2066 = vadd.f32 %v1820, %v1996
      %v2067 = vadd.f32 %v1821, %v1999
      %v2068 = vadd.f32 %v1822, %v2001
      %v2069 = vadd.f32 %v1823, %v2004
      %v2070 = vadd.f32 %v1824, %v2006
      %v2072 = vlaneseq
      %v2073 = vshrl.u32 %v2072, 7
      %v2074 = vsub.s32 0, %v2073
      %v2075 = vrot.slane %v414, %v2074
      %v2077 = vadd.f32 %v2039, %v2075
      %v2078 = vadd.f32 %v2040, %v2075
      %v2079 = vadd.f32 %v2041, %v2075
      %v2080 = vadd.f32 %v2042, %v2075
      %v2081 = vadd.f32 %v2043, %v2075
      %v2082 = vadd.f32 %v2044, %v2075
      %v2083 = vadd.f32 %v2045, %v2075
      %v2084 = vadd.f32 %v2046, %v2075
      %v2085 = vadd.f32 %v2047, %v2075
      %v2086 = vadd.f32 %v2048, %v2075
      %v2087 = vadd.f32 %v2049, %v2075
      %v2088 = vadd.f32 %v2050, %v2075
      %v2089 = vadd.f32 %v2051, %v2075
      %v2090 = vadd.f32 %v2052, %v2075
      %v2091 = vadd.f32 %v2053, %v2075
      %v2092 = vadd.f32 %v2054, %v2075
      %v2093 = vadd.f32 %v2055, %v2075
      %v2094 = vadd.f32 %v2056, %v2075
      %v2095 = vadd.f32 %v2057, %v2075
      %v2096 = vadd.f32 %v2058, %v2075
      %v2097 = vadd.f32 %v2059, %v2075
      %v2098 = vadd.f32 %v2060, %v2075
      %v2099 = vadd.f32 %v2061, %v2075
      %v2100 = vadd.f32 %v2062, %v2075
      %v2101 = vadd.f32 %v2063, %v2075
      %v2102 = vadd.f32 %v2064, %v2075
      %v2103 = vadd.f32 %v2065, %v2075
      %v2104 = vadd.f32 %v2066, %v2075
      %v2105 = vadd.f32 %v2067, %v2075
      %v2106 = vadd.f32 %v2068, %v2075
      %v2107 = vadd.f32 %v2069, %v2075
      %v2108 = vadd.f32 %v2070, %v2075
      %2109 = vst.msk [vmem:[%s229] sm:$0xff] %vm230, %v2077
      %2110 = vst.msk [vmem:[%s229 + $0x8] sm:$0xff] %vm230, %v2078
      %2111 = vst.msk [vmem:[%s229 + $0x10] sm:$0xff] %vm230, %v2079
      %2112 = vst.msk [vmem:[%s229 + $0x18] sm:$0xff] %vm230, %v2080
      %2113 = vst.msk [vmem:[%s229 + $0x20] sm:$0xff] %vm230, %v2081
      %2114 = vst.msk [vmem:[%s229 + $0x28] sm:$0xff] %vm230, %v2082
      %2115 = vst.msk [vmem:[%s229 + $0x30] sm:$0xff] %vm230, %v2083
      %2116 = vst.msk [vmem:[%s229 + $0x38] sm:$0xff] %vm230, %v2084
      %2117 = vst.msk [vmem:[%s229 + $0x40] sm:$0xff] %vm230, %v2085
      %2118 = vst.msk [vmem:[%s229 + $0x48] sm:$0xff] %vm230, %v2086
      %2119 = vst.msk [vmem:[%s229 + $0x50] sm:$0xff] %vm230, %v2087
      %2120 = vst.msk [vmem:[%s229 + $0x58] sm:$0xff] %vm230, %v2088
      %2121 = vst.msk [vmem:[%s229 + $0x60] sm:$0xff] %vm230, %v2089
      %2122 = vst.msk [vmem:[%s229 + $0x68] sm:$0xff] %vm230, %v2090
      %2123 = vst.msk [vmem:[%s229 + $0x70] sm:$0xff] %vm230, %v2091
      %2124 = vst.msk [vmem:[%s229 + $0x78] sm:$0xff] %vm230, %v2092
      %2125 = vst.msk [vmem:[%s229 + $0x80] sm:$0xff] %vm230, %v2093
      %2126 = vst.msk [vmem:[%s229 + $0x88] sm:$0xff] %vm230, %v2094
      %2127 = vst.msk [vmem:[%s229 + $0x90] sm:$0xff] %vm230, %v2095
      %2128 = vst.msk [vmem:[%s229 + $0x98] sm:$0xff] %vm230, %v2096
      %2129 = vst.msk [vmem:[%s229 + $0xa0] sm:$0xff] %vm230, %v2097
      %2130 = vst.msk [vmem:[%s229 + $0xa8] sm:$0xff] %vm230, %v2098
      %2131 = vst.msk [vmem:[%s229 + $0xb0] sm:$0xff] %vm230, %v2099
      %2132 = vst.msk [vmem:[%s229 + $0xb8] sm:$0xff] %vm230, %v2100
      %2133 = vst.msk [vmem:[%s229 + $0xc0] sm:$0xff] %vm230, %v2101
      %2134 = vst.msk [vmem:[%s229 + $0xc8] sm:$0xff] %vm230, %v2102
      %2135 = vst.msk [vmem:[%s229 + $0xd0] sm:$0xff] %vm230, %v2103
      %2136 = vst.msk [vmem:[%s229 + $0xd8] sm:$0xff] %vm230, %v2104
      %2137 = vst.msk [vmem:[%s229 + $0xe0] sm:$0xff] %vm230, %v2105
      %2138 = vst.msk [vmem:[%s229 + $0xe8] sm:$0xff] %vm230, %v2106
      %2139 = vst.msk [vmem:[%s229 + $0xf0] sm:$0xff] %vm230, %v2107
      %2140 = vst.msk [vmem:[%s229 + $0xf8] sm:$0xff] %vm230, %v2108
      %p2141 = scmp.lt.s32.totalorder %s19, 1
      %s2142 = scalar_select %p2141, %s19, 1
      %p2143 = scmp.lt.s32.totalorder %s18, 0
      %s2144 = scalar_select %p2143, %s18, 0
      %s2145 = smul.addr %s2142, 32
      %s2146 = sadd.s32 %s2144, %s2145
      %s2147 = smul.addr %s2146, 8
      %s2148 = scalar_lea.vmem %s3, %s2147
      // Predicated region
      $region33: #{tpu_custom_call.1} parent=31 // pred_check
        %p2149 = pneg %p126
      $region34: #{tpu_custom_call.1} parent=31 // pred_check_branch
        %2151 = sbr.rel (%p2149) target = $region36
      $region35: #{tpu_custom_call.1} parent=31 // pred_region
        _
      $region36: #{tpu_custom_call.1} parent=31 // pred_fallthru
        _
    $region32: #{tpu_custom_call.1} parent=5 // pred_fallthru
      _
    %p2152 = scmp.le.s32.totalorder 2, %s9
    // Predicated region
    $region37: #{tpu_custom_call.1} parent=5 // pred_check
      %p2153 = pneg %p2152
    $region38: #{tpu_custom_call.1} parent=5 // pred_check_branch
      %2155 = sbr.rel (%p2153) target = $region40
    $region39: #{tpu_custom_call.1} parent=5 // pred_region
      %s2156 = ssub.s32 %s9, 2
      // Predicated region
      $region41: #{tpu_custom_call.1} parent=39 // pred_check
        %p2157 = pneg %p132
      $region42: #{tpu_custom_call.1} parent=39 // pred_check_branch
        %2159 = sbr.rel (%p2157) target = $region44
      $region43: #{tpu_custom_call.1} parent=39 // pred_region
        %p2160 = scmp.lt.s32.totalorder %s21, 1
        %s2161 = scalar_select %p2160, %s21, 1
        %p2162 = scmp.lt.s32.totalorder %s20, 0
        %s2163 = scalar_select %p2162, %s20, 0
        %s2164 = smul.addr %s2161, 32
        %s2165 = sadd.s32 %s2163, %s2164
        %s2166 = smul.addr %s2165, 8
        %s2167 = scalar_lea.vmem %s3, %s2166
      $region44: #{tpu_custom_call.1} parent=39 // pred_fallthru
        _
    $region40: #{tpu_custom_call.1} parent=5 // pred_fallthru
      _
  $region6: #{tpu_custom_call.1} parent=0 // loop_footer
    %s13 = sadd.s32 1, %s9
  $region7: #{tpu_custom_call.1} parent=0 // loop_footer_branch
    %8 = sbr.rel target = $region3
  $region8: #{tpu_custom_call.1} parent=0 // loop_exit
    _

</llo_original>
